<compile_context>
chip_gen: v6e
topology: v6e:2x2x1
jax: 0.10.0
libtpu: 0.0.40
codegen_flags: <defaults>
</compile_context>

<pallas_src>
import jax
import jax.numpy as jnp
import numpy as np
from jax import lax
from jax.experimental import pallas as pl
from jax.experimental.pallas import tpu as pltpu

EPS = 1e-5


# ----------------------------- kernel helpers ------------------------------
def _conv3x3_reflect(xb, w3):
    """3x3 reflect-padded conv as 3 matmuls (one per kernel row).

    xb: (H, W, C) bf16. w3: (3, 3*C, C) bf16, contraction rows ordered [kw, cin].
    Returns (H*W, C) f32; per-row accumulation happens inside the MXU.
    """
    H, W, C = xb.shape
    # reflect pad along W only
    xw = jnp.concatenate([xb[:, 1:2], xb, xb[:, W - 2:W - 1]], axis=1)  # (H, W+2, C)
    rows = (
        jnp.concatenate([xw[1:2], xw[:H - 1]], axis=0),      # kh = 0 (top reflect)
        xw,                                                   # kh = 1
        jnp.concatenate([xw[1:H], xw[H - 2:H - 1]], axis=0),  # kh = 2 (bottom reflect)
    )
    acc = None
    for kh in range(3):
        r = rows[kh]
        # three kw-shifted windows stacked along the lane (channel) axis
        patch = jnp.concatenate(
            [r[:, 0:W], r[:, 1:W + 1], r[:, 2:W + 2]], axis=-1
        ).reshape(H * W, 3 * C)
        m = jnp.dot(patch, w3[kh], preferred_element_type=jnp.float32)
        acc = m if acc is None else acc + m
    return acc


def _in_stats(y, inv_n):
    """Single-pass InstanceNorm statistics (biased variance) over spatial dim."""
    s = jnp.sum(y, axis=0, keepdims=True)          # (1, C)
    ss = jnp.sum(y * y, axis=0, keepdims=True)     # (1, C)
    mean = s * inv_n
    var = ss * inv_n - mean * mean
    return mean, lax.rsqrt(var + EPS)


# --------------------------------- kernel ----------------------------------
def residual_block_kernel(x_ref, w1_ref, w2_ref, o_ref):
    x = x_ref[0]                                   # (H, W, C)
    H, W, C = x.shape
    inv_n = 1.0 / (H * W)
    xf = x.astype(jnp.float32)

    # ConvBlock 1: conv (bf16 MXU, f32 acc) -> fused single-pass IN -> ReLU
    # (conv bias intentionally omitted: cancelled exactly by IN mean subtraction)
    y1 = _conv3x3_reflect(x.astype(jnp.bfloat16), w1_ref[...])      # (HW, C) f32
    mean1, scale1 = _in_stats(y1, inv_n)
    h = jnp.maximum((y1 - mean1) * scale1, 0.0).astype(jnp.bfloat16)

    # ConvBlock 2: conv -> fused IN + residual add + output cast
    y2 = _conv3x3_reflect(h.reshape(H, W, C), w2_ref[...])          # (HW, C) f32
    mean2, scale2 = _in_stats(y2, inv_n)
    out = xf + ((y2 - mean2) * scale2).reshape(H, W, C)
    o_ref[0] = out.astype(o_ref.dtype)


# -------------------------------- wrapper ----------------------------------
def residual_block(x_nhwc, w1, w2):
    """x_nhwc: (N, H, W, C). w1, w2: (3, 3, C, C) in [kh, kw, cin, cout] layout.

    Channels-last throughout; conv biases are not needed (see kernel note).
    """
    N, H, W, C = x_nhwc.shape
    # Fold kw into the contraction axis and pre-cast to bf16 once (hoisted).
    w1b = w1.reshape(3, 3 * C, C).astype(jnp.bfloat16)
    w2b = w2.reshape(3, 3 * C, C).astype(jnp.bfloat16)

    return pl.pallas_call(
        residual_block_kernel,
        out_shape=jax.ShapeDtypeStruct((N, H, W, C), x_nhwc.dtype),
        grid_spec=pltpu.PrefetchScalarGridSpec(
            num_scalar_prefetch=0,
            grid=(N,),
            in_specs=[
                pl.BlockSpec((1, H, W, C), lambda n: (n, 0, 0, 0)),
                pl.BlockSpec((3, 3 * C, C), lambda n: (0, 0, 0)),
                pl.BlockSpec((3, 3 * C, C), lambda n: (0, 0, 0)),
            ],
            out_specs=pl.BlockSpec((1, H, W, C), lambda n: (n, 0, 0, 0)),
        ),
        compiler_params=pltpu.CompilerParams(
            dimension_semantics=("parallel",),
            vmem_limit_bytes=64 * 1024 * 1024,
        ),
    )(x_nhwc, w1b, w2b)


# ---------------- pure-JAX reference (PyTorch semantics, NCHW) --------------
def _ref_conv3x3_reflect_nchw(x, w, b):
    # x: (N, C, H, W); w: (3,3,Cin,Cout) -> torch layout (Cout,Cin,3,3)
    w_oihw = jnp.transpose(w, (3, 2, 0, 1))
    xp = jnp.pad(x, ((0, 0), (0, 0), (1, 1), (1, 1)), mode="reflect")
    y = lax.conv_general_dilated(
        xp, w_oihw, window_strides=(1, 1), padding="VALID",
        dimension_numbers=("NCHW", "OIHW", "NCHW"))
    return y + b.reshape(1, -1, 1, 1)


def _ref_instance_norm_nchw(y):
    mean = jnp.mean(y, axis=(2, 3), keepdims=True)
    var = jnp.mean((y - mean) ** 2, axis=(2, 3), keepdims=True)
    return (y - mean) * lax.rsqrt(var + EPS)


def residual_block_ref(x, w1, b1, w2, b2):
    y = _ref_conv3x3_reflect_nchw(x, w1, b1)
    y = jnp.maximum(_ref_instance_norm_nchw(y), 0.0)
    y = _ref_conv3x3_reflect_nchw(y, w2, b2)
    y = _ref_instance_norm_nchw(y)
    return x + y


if __name__ == "__main__":
    N, C, H, W = 2, 4, 16, 16
    key = jax.random.PRNGKey(0)
    kx, kw1, kb1, kw2, kb2 = jax.random.split(key, 5)

    x_nchw = jax.random.normal(kx, (N, C, H, W), dtype=jnp.float32)
    # synthetic parameters; shapes follow nn.Conv2d(C, C, 3) ([kh,kw,cin,cout] here)
    w1 = jax.random.normal(kw1, (3, 3, C, C), dtype=jnp.float32) * 0.1
    b1 = jax.random.normal(kb1, (1, C), dtype=jnp.float32) * 0.1
    w2 = jax.random.normal(kw2, (3, 3, C, C), dtype=jnp.float32) * 0.1
    b2 = jax.random.normal(kb2, (1, C), dtype=jnp.float32) * 0.1

    # kernel path is NHWC end to end (transposes here are only for comparison
    # against the PyTorch-layout reference)
    x_nhwc = jnp.transpose(x_nchw, (0, 2, 3, 1))
    out_nhwc = jax.block_until_ready(residual_block(x_nhwc, w1, w2))
    out = jnp.transpose(out_nhwc, (0, 3, 1, 2))

    # reference includes the conv biases; the kernel drops them (exactly
    # cancelled by InstanceNorm). Tolerance reflects the deliberate bf16 MXU path.
    ref = jax.block_until_ready(residual_block_ref(x_nchw, w1, b1, w2, b2))
    assert out.shape == (N, C, H, W)
    np.testing.assert_allclose(np.asarray(out), np.asarray(ref),
                               rtol=3e-2, atol=3e-2)
    print("KERNEL_OK")
</pallas_src>

<mosaic_0001>
module attributes {stable_mosaic.version = 11 : i64} {
  func.func @residual_block_kernel(%arg0: i32, %arg1: memref<1x16x16x4xf32, #tpu.memory_space<vmem>>, %arg2: memref<3x12x4xbf16, #tpu.memory_space<vmem>>, %arg3: memref<3x12x4xbf16, #tpu.memory_space<vmem>>, %arg4: memref<1x16x16x4xf32, #tpu.memory_space<vmem>>) attributes {dimension_semantics = [#tpu.dimension_semantics<parallel>], iteration_bounds = array<i64: 2>, scalar_prefetch = 0 : i64, scratch_operands = 0 : i64, tpu.core_type = #tpu.core_type<tc>, window_params = [{transform_indices = @transform_0, window_bounds = array<i64: 1, 16, 16, 4>}, {pipeline_mode = #tpu.pipeline_mode<synchronous>, transform_indices = @transform_1, window_bounds = array<i64: 3, 12, 4>}, {pipeline_mode = #tpu.pipeline_mode<synchronous>, transform_indices = @transform_2, window_bounds = array<i64: 3, 12, 4>}, {transform_indices = @transform_3, window_bounds = array<i64: 1, 16, 16, 4>}]} {
    %c0 = arith.constant 0 : index
    %c0_0 = arith.constant 0 : index
    %c0_1 = arith.constant 0 : index
    %c0_2 = arith.constant 0 : index
    %0 = vector.load %arg1[%c0, %c0_0, %c0_1, %c0_2] : memref<1x16x16x4xf32, #tpu.memory_space<vmem>>, vector<1x16x16x4xf32>
    %1 = vector.shape_cast %0 : vector<1x16x16x4xf32> to vector<16x16x4xf32>
    %2 = arith.truncf %1 : vector<16x16x4xf32> to vector<16x16x4xbf16>
    %c0_3 = arith.constant 0 : index
    %c0_4 = arith.constant 0 : index
    %c0_5 = arith.constant 0 : index
    %3 = vector.load %arg2[%c0_3, %c0_4, %c0_5] : memref<3x12x4xbf16, #tpu.memory_space<vmem>>, vector<3x12x4xbf16>
    %4 = vector.extract_strided_slice %2 {offsets = [0, 1, 0], sizes = [16, 1, 4], strides = [1, 1, 1]} : vector<16x16x4xbf16> to vector<16x1x4xbf16>
    %5 = vector.extract_strided_slice %2 {offsets = [0, 14, 0], sizes = [16, 1, 4], strides = [1, 1, 1]} : vector<16x16x4xbf16> to vector<16x1x4xbf16>
    %6 = tpu.concatenate %4, %2, %5 in 1 : vector<16x1x4xbf16>, vector<16x16x4xbf16>, vector<16x1x4xbf16> -> vector<16x18x4xbf16>
    %7 = vector.extract_strided_slice %6 {offsets = [1, 0, 0], sizes = [1, 18, 4], strides = [1, 1, 1]} : vector<16x18x4xbf16> to vector<1x18x4xbf16>
    %8 = vector.extract_strided_slice %6 {offsets = [0, 0, 0], sizes = [15, 18, 4], strides = [1, 1, 1]} : vector<16x18x4xbf16> to vector<15x18x4xbf16>
    %9 = tpu.concatenate %7, %8 in 0 : vector<1x18x4xbf16>, vector<15x18x4xbf16> -> vector<16x18x4xbf16>
    %10 = vector.extract_strided_slice %6 {offsets = [1, 0, 0], sizes = [15, 18, 4], strides = [1, 1, 1]} : vector<16x18x4xbf16> to vector<15x18x4xbf16>
    %11 = vector.extract_strided_slice %6 {offsets = [14, 0, 0], sizes = [1, 18, 4], strides = [1, 1, 1]} : vector<16x18x4xbf16> to vector<1x18x4xbf16>
    %12 = tpu.concatenate %10, %11 in 0 : vector<15x18x4xbf16>, vector<1x18x4xbf16> -> vector<16x18x4xbf16>
    %13 = vector.extract_strided_slice %9 {offsets = [0, 0, 0], sizes = [16, 16, 4], strides = [1, 1, 1]} : vector<16x18x4xbf16> to vector<16x16x4xbf16>
    %14 = vector.extract_strided_slice %9 {offsets = [0, 1, 0], sizes = [16, 16, 4], strides = [1, 1, 1]} : vector<16x18x4xbf16> to vector<16x16x4xbf16>
    %15 = vector.extract_strided_slice %9 {offsets = [0, 2, 0], sizes = [16, 16, 4], strides = [1, 1, 1]} : vector<16x18x4xbf16> to vector<16x16x4xbf16>
    %16 = tpu.concatenate %13, %14, %15 in 2 : vector<16x16x4xbf16>, vector<16x16x4xbf16>, vector<16x16x4xbf16> -> vector<16x16x12xbf16>
    %17 = vector.shape_cast %16 : vector<16x16x12xbf16> to vector<256x12xbf16>
    %18 = vector.extract_strided_slice %3 {offsets = [0, 0, 0], sizes = [1, 12, 4], strides = [1, 1, 1]} : vector<3x12x4xbf16> to vector<1x12x4xbf16>
    %19 = vector.shape_cast %18 : vector<1x12x4xbf16> to vector<12x4xbf16>
    %cst = arith.constant dense<0.000000e+00> : vector<256x4xf32>
    %20 = tpu.matmul %17, %19, %cst {dimension_numbers = #tpu.dot_dimension_numbers<[1], [0], [0], [1], [0, 0, 1, 1], [], []>} : vector<256x12xbf16>, vector<12x4xbf16>, vector<256x4xf32> -> vector<256x4xf32>
    %21 = vector.extract_strided_slice %6 {offsets = [0, 0, 0], sizes = [16, 16, 4], strides = [1, 1, 1]} : vector<16x18x4xbf16> to vector<16x16x4xbf16>
    %22 = vector.extract_strided_slice %6 {offsets = [0, 1, 0], sizes = [16, 16, 4], strides = [1, 1, 1]} : vector<16x18x4xbf16> to vector<16x16x4xbf16>
    %23 = vector.extract_strided_slice %6 {offsets = [0, 2, 0], sizes = [16, 16, 4], strides = [1, 1, 1]} : vector<16x18x4xbf16> to vector<16x16x4xbf16>
    %24 = tpu.concatenate %21, %22, %23 in 2 : vector<16x16x4xbf16>, vector<16x16x4xbf16>, vector<16x16x4xbf16> -> vector<16x16x12xbf16>
    %25 = vector.shape_cast %24 : vector<16x16x12xbf16> to vector<256x12xbf16>
    %26 = vector.extract_strided_slice %3 {offsets = [1, 0, 0], sizes = [1, 12, 4], strides = [1, 1, 1]} : vector<3x12x4xbf16> to vector<1x12x4xbf16>
    %27 = vector.shape_cast %26 : vector<1x12x4xbf16> to vector<12x4xbf16>
    %cst_6 = arith.constant dense<0.000000e+00> : vector<256x4xf32>
    %28 = tpu.matmul %25, %27, %cst_6 {dimension_numbers = #tpu.dot_dimension_numbers<[1], [0], [0], [1], [0, 0, 1, 1], [], []>} : vector<256x12xbf16>, vector<12x4xbf16>, vector<256x4xf32> -> vector<256x4xf32>
    %29 = arith.addf %20, %28 : vector<256x4xf32>
    %30 = vector.extract_strided_slice %12 {offsets = [0, 0, 0], sizes = [16, 16, 4], strides = [1, 1, 1]} : vector<16x18x4xbf16> to vector<16x16x4xbf16>
    %31 = vector.extract_strided_slice %12 {offsets = [0, 1, 0], sizes = [16, 16, 4], strides = [1, 1, 1]} : vector<16x18x4xbf16> to vector<16x16x4xbf16>
    %32 = vector.extract_strided_slice %12 {offsets = [0, 2, 0], sizes = [16, 16, 4], strides = [1, 1, 1]} : vector<16x18x4xbf16> to vector<16x16x4xbf16>
    %33 = tpu.concatenate %30, %31, %32 in 2 : vector<16x16x4xbf16>, vector<16x16x4xbf16>, vector<16x16x4xbf16> -> vector<16x16x12xbf16>
    %34 = vector.shape_cast %33 : vector<16x16x12xbf16> to vector<256x12xbf16>
    %35 = vector.extract_strided_slice %3 {offsets = [2, 0, 0], sizes = [1, 12, 4], strides = [1, 1, 1]} : vector<3x12x4xbf16> to vector<1x12x4xbf16>
    %36 = vector.shape_cast %35 : vector<1x12x4xbf16> to vector<12x4xbf16>
    %cst_7 = arith.constant dense<0.000000e+00> : vector<256x4xf32>
    %37 = tpu.matmul %34, %36, %cst_7 {dimension_numbers = #tpu.dot_dimension_numbers<[1], [0], [0], [1], [0, 0, 1, 1], [], []>} : vector<256x12xbf16>, vector<12x4xbf16>, vector<256x4xf32> -> vector<256x4xf32>
    %38 = arith.addf %29, %37 : vector<256x4xf32>
    %cst_8 = arith.constant dense<0.000000e+00> : vector<4xf32>
    %39 = vector.multi_reduction <add>, %38, %cst_8 [0] : vector<256x4xf32> to vector<4xf32>
    %40 = vector.shape_cast %39 : vector<4xf32> to vector<1x4xf32>
    %41 = arith.mulf %38, %38 : vector<256x4xf32>
    %cst_9 = arith.constant dense<0.000000e+00> : vector<4xf32>
    %42 = vector.multi_reduction <add>, %41, %cst_9 [0] : vector<256x4xf32> to vector<4xf32>
    %43 = vector.shape_cast %42 : vector<4xf32> to vector<1x4xf32>
    %cst_10 = arith.constant 3.906250e-03 : f32
    %44 = vector.broadcast %cst_10 : f32 to vector<1x4xf32>
    %45 = arith.mulf %40, %44 : vector<1x4xf32>
    %cst_11 = arith.constant 3.906250e-03 : f32
    %46 = vector.broadcast %cst_11 : f32 to vector<1x4xf32>
    %47 = arith.mulf %43, %46 : vector<1x4xf32>
    %48 = arith.mulf %45, %45 : vector<1x4xf32>
    %49 = arith.subf %47, %48 : vector<1x4xf32>
    %cst_12 = arith.constant 9.99999974E-6 : f32
    %50 = vector.broadcast %cst_12 : f32 to vector<1x4xf32>
    %51 = arith.addf %49, %50 : vector<1x4xf32>
    %52 = math.rsqrt %51 : vector<1x4xf32>
    %53 = vector.broadcast %45 : vector<1x4xf32> to vector<256x4xf32>
    %54 = arith.subf %38, %53 : vector<256x4xf32>
    %55 = vector.broadcast %52 : vector<1x4xf32> to vector<256x4xf32>
    %56 = arith.mulf %54, %55 : vector<256x4xf32>
    %cst_13 = arith.constant 0.000000e+00 : f32
    %57 = vector.broadcast %cst_13 : f32 to vector<256x4xf32>
    %58 = arith.maximumf %56, %57 : vector<256x4xf32>
    %59 = arith.truncf %58 : vector<256x4xf32> to vector<256x4xbf16>
    %60 = vector.shape_cast %59 : vector<256x4xbf16> to vector<16x16x4xbf16>
    %c0_14 = arith.constant 0 : index
    %c0_15 = arith.constant 0 : index
    %c0_16 = arith.constant 0 : index
    %61 = vector.load %arg3[%c0_14, %c0_15, %c0_16] : memref<3x12x4xbf16, #tpu.memory_space<vmem>>, vector<3x12x4xbf16>
    %62 = vector.extract_strided_slice %60 {offsets = [0, 1, 0], sizes = [16, 1, 4], strides = [1, 1, 1]} : vector<16x16x4xbf16> to vector<16x1x4xbf16>
    %63 = vector.extract_strided_slice %60 {offsets = [0, 14, 0], sizes = [16, 1, 4], strides = [1, 1, 1]} : vector<16x16x4xbf16> to vector<16x1x4xbf16>
    %64 = tpu.concatenate %62, %60, %63 in 1 : vector<16x1x4xbf16>, vector<16x16x4xbf16>, vector<16x1x4xbf16> -> vector<16x18x4xbf16>
    %65 = vector.extract_strided_slice %64 {offsets = [1, 0, 0], sizes = [1, 18, 4], strides = [1, 1, 1]} : vector<16x18x4xbf16> to vector<1x18x4xbf16>
    %66 = vector.extract_strided_slice %64 {offsets = [0, 0, 0], sizes = [15, 18, 4], strides = [1, 1, 1]} : vector<16x18x4xbf16> to vector<15x18x4xbf16>
    %67 = tpu.concatenate %65, %66 in 0 : vector<1x18x4xbf16>, vector<15x18x4xbf16> -> vector<16x18x4xbf16>
    %68 = vector.extract_strided_slice %64 {offsets = [1, 0, 0], sizes = [15, 18, 4], strides = [1, 1, 1]} : vector<16x18x4xbf16> to vector<15x18x4xbf16>
    %69 = vector.extract_strided_slice %64 {offsets = [14, 0, 0], sizes = [1, 18, 4], strides = [1, 1, 1]} : vector<16x18x4xbf16> to vector<1x18x4xbf16>
    %70 = tpu.concatenate %68, %69 in 0 : vector<15x18x4xbf16>, vector<1x18x4xbf16> -> vector<16x18x4xbf16>
    %71 = vector.extract_strided_slice %67 {offsets = [0, 0, 0], sizes = [16, 16, 4], strides = [1, 1, 1]} : vector<16x18x4xbf16> to vector<16x16x4xbf16>
    %72 = vector.extract_strided_slice %67 {offsets = [0, 1, 0], sizes = [16, 16, 4], strides = [1, 1, 1]} : vector<16x18x4xbf16> to vector<16x16x4xbf16>
    %73 = vector.extract_strided_slice %67 {offsets = [0, 2, 0], sizes = [16, 16, 4], strides = [1, 1, 1]} : vector<16x18x4xbf16> to vector<16x16x4xbf16>
    %74 = tpu.concatenate %71, %72, %73 in 2 : vector<16x16x4xbf16>, vector<16x16x4xbf16>, vector<16x16x4xbf16> -> vector<16x16x12xbf16>
    %75 = vector.shape_cast %74 : vector<16x16x12xbf16> to vector<256x12xbf16>
    %76 = vector.extract_strided_slice %61 {offsets = [0, 0, 0], sizes = [1, 12, 4], strides = [1, 1, 1]} : vector<3x12x4xbf16> to vector<1x12x4xbf16>
    %77 = vector.shape_cast %76 : vector<1x12x4xbf16> to vector<12x4xbf16>
    %cst_17 = arith.constant dense<0.000000e+00> : vector<256x4xf32>
    %78 = tpu.matmul %75, %77, %cst_17 {dimension_numbers = #tpu.dot_dimension_numbers<[1], [0], [0], [1], [0, 0, 1, 1], [], []>} : vector<256x12xbf16>, vector<12x4xbf16>, vector<256x4xf32> -> vector<256x4xf32>
    %79 = vector.extract_strided_slice %64 {offsets = [0, 0, 0], sizes = [16, 16, 4], strides = [1, 1, 1]} : vector<16x18x4xbf16> to vector<16x16x4xbf16>
    %80 = vector.extract_strided_slice %64 {offsets = [0, 1, 0], sizes = [16, 16, 4], strides = [1, 1, 1]} : vector<16x18x4xbf16> to vector<16x16x4xbf16>
    %81 = vector.extract_strided_slice %64 {offsets = [0, 2, 0], sizes = [16, 16, 4], strides = [1, 1, 1]} : vector<16x18x4xbf16> to vector<16x16x4xbf16>
    %82 = tpu.concatenate %79, %80, %81 in 2 : vector<16x16x4xbf16>, vector<16x16x4xbf16>, vector<16x16x4xbf16> -> vector<16x16x12xbf16>
    %83 = vector.shape_cast %82 : vector<16x16x12xbf16> to vector<256x12xbf16>
    %84 = vector.extract_strided_slice %61 {offsets = [1, 0, 0], sizes = [1, 12, 4], strides = [1, 1, 1]} : vector<3x12x4xbf16> to vector<1x12x4xbf16>
    %85 = vector.shape_cast %84 : vector<1x12x4xbf16> to vector<12x4xbf16>
    %cst_18 = arith.constant dense<0.000000e+00> : vector<256x4xf32>
    %86 = tpu.matmul %83, %85, %cst_18 {dimension_numbers = #tpu.dot_dimension_numbers<[1], [0], [0], [1], [0, 0, 1, 1], [], []>} : vector<256x12xbf16>, vector<12x4xbf16>, vector<256x4xf32> -> vector<256x4xf32>
    %87 = arith.addf %78, %86 : vector<256x4xf32>
    %88 = vector.extract_strided_slice %70 {offsets = [0, 0, 0], sizes = [16, 16, 4], strides = [1, 1, 1]} : vector<16x18x4xbf16> to vector<16x16x4xbf16>
    %89 = vector.extract_strided_slice %70 {offsets = [0, 1, 0], sizes = [16, 16, 4], strides = [1, 1, 1]} : vector<16x18x4xbf16> to vector<16x16x4xbf16>
    %90 = vector.extract_strided_slice %70 {offsets = [0, 2, 0], sizes = [16, 16, 4], strides = [1, 1, 1]} : vector<16x18x4xbf16> to vector<16x16x4xbf16>
    %91 = tpu.concatenate %88, %89, %90 in 2 : vector<16x16x4xbf16>, vector<16x16x4xbf16>, vector<16x16x4xbf16> -> vector<16x16x12xbf16>
    %92 = vector.shape_cast %91 : vector<16x16x12xbf16> to vector<256x12xbf16>
    %93 = vector.extract_strided_slice %61 {offsets = [2, 0, 0], sizes = [1, 12, 4], strides = [1, 1, 1]} : vector<3x12x4xbf16> to vector<1x12x4xbf16>
    %94 = vector.shape_cast %93 : vector<1x12x4xbf16> to vector<12x4xbf16>
    %cst_19 = arith.constant dense<0.000000e+00> : vector<256x4xf32>
    %95 = tpu.matmul %92, %94, %cst_19 {dimension_numbers = #tpu.dot_dimension_numbers<[1], [0], [0], [1], [0, 0, 1, 1], [], []>} : vector<256x12xbf16>, vector<12x4xbf16>, vector<256x4xf32> -> vector<256x4xf32>
    %96 = arith.addf %87, %95 : vector<256x4xf32>
    %cst_20 = arith.constant dense<0.000000e+00> : vector<4xf32>
    %97 = vector.multi_reduction <add>, %96, %cst_20 [0] : vector<256x4xf32> to vector<4xf32>
    %98 = vector.shape_cast %97 : vector<4xf32> to vector<1x4xf32>
    %99 = arith.mulf %96, %96 : vector<256x4xf32>
    %cst_21 = arith.constant dense<0.000000e+00> : vector<4xf32>
    %100 = vector.multi_reduction <add>, %99, %cst_21 [0] : vector<256x4xf32> to vector<4xf32>
    %101 = vector.shape_cast %100 : vector<4xf32> to vector<1x4xf32>
    %cst_22 = arith.constant 3.906250e-03 : f32
    %102 = vector.broadcast %cst_22 : f32 to vector<1x4xf32>
    %103 = arith.mulf %98, %102 : vector<1x4xf32>
    %cst_23 = arith.constant 3.906250e-03 : f32
    %104 = vector.broadcast %cst_23 : f32 to vector<1x4xf32>
    %105 = arith.mulf %101, %104 : vector<1x4xf32>
    %106 = arith.mulf %103, %103 : vector<1x4xf32>
    %107 = arith.subf %105, %106 : vector<1x4xf32>
    %cst_24 = arith.constant 9.99999974E-6 : f32
    %108 = vector.broadcast %cst_24 : f32 to vector<1x4xf32>
    %109 = arith.addf %107, %108 : vector<1x4xf32>
    %110 = math.rsqrt %109 : vector<1x4xf32>
    %111 = vector.broadcast %103 : vector<1x4xf32> to vector<256x4xf32>
    %112 = arith.subf %96, %111 : vector<256x4xf32>
    %113 = vector.broadcast %110 : vector<1x4xf32> to vector<256x4xf32>
    %114 = arith.mulf %112, %113 : vector<256x4xf32>
    %115 = vector.shape_cast %114 : vector<256x4xf32> to vector<16x16x4xf32>
    %116 = arith.addf %1, %115 : vector<16x16x4xf32>
    %c0_25 = arith.constant 0 : index
    %c0_26 = arith.constant 0 : index
    %c0_27 = arith.constant 0 : index
    %c0_28 = arith.constant 0 : index
    %117 = vector.load %arg4[%c0_25, %c0_26, %c0_27, %c0_28] : memref<1x16x16x4xf32, #tpu.memory_space<vmem>>, vector<1x16x16x4xf32>
    %118 = vector.shape_cast %117 : vector<1x16x16x4xf32> to vector<16x16x4xf32>
    %119 = vector.shape_cast %116 : vector<16x16x4xf32> to vector<1x16x16x4xf32>
    tpu.vector_store %arg4[%c0_25, %c0_26, %c0_27, %c0_28], %119 {strides = array<i32>} : memref<1x16x16x4xf32, #tpu.memory_space<vmem>>, vector<1x16x16x4xf32>,
    return
  }
  func.func @transform_0(%arg0: i32) -> (i32, i32, i32, i32) {
    %c0_i32 = arith.constant 0 : i32
    %c0_i32_0 = arith.constant 0 : i32
    %c0_i32_1 = arith.constant 0 : i32
    %c0_i32_2 = arith.constant 0 : i32
    return %arg0, %c0_i32, %c0_i32_0, %c0_i32_1 : i32, i32, i32, i32
  }
  func.func @transform_1(%arg0: i32) -> (i32, i32, i32) {
    %c0_i32 = arith.constant 0 : i32
    %c0_i32_0 = arith.constant 0 : i32
    %c0_i32_1 = arith.constant 0 : i32
    %c0_i32_2 = arith.constant 0 : i32
    return %c0_i32, %c0_i32_0, %c0_i32_1 : i32, i32, i32
  }
  func.func @transform_2(%arg0: i32) -> (i32, i32, i32) {
    %c0_i32 = arith.constant 0 : i32
    %c0_i32_0 = arith.constant 0 : i32
    %c0_i32_1 = arith.constant 0 : i32
    %c0_i32_2 = arith.constant 0 : i32
    return %c0_i32, %c0_i32_0, %c0_i32_1 : i32, i32, i32
  }
  func.func @transform_3(%arg0: i32) -> (i32, i32, i32, i32) {
    %c0_i32 = arith.constant 0 : i32
    %c0_i32_0 = arith.constant 0 : i32
    %c0_i32_1 = arith.constant 0 : i32
    %c0_i32_2 = arith.constant 0 : i32
    return %arg0, %c0_i32, %c0_i32_0, %c0_i32_1 : i32, i32, i32, i32
  }
}

</mosaic_0001>

<llo_original>
// kernel: tpu_custom_call.1
$region0: #{tpu_custom_call.1}
  #allocation0 [shape = 'u32[]', space=smem, size = 0x4, offset = 0x4, fixed_abs, tag = 'smem constant byte address 0x4 - core index']
  #allocation1 [shape = 'u32[144,128]{1,0:T(1,128)}', space=vmem, size = 0x12000, scoped, tag = 'internal scratch']
  %s0 = inlined_call_operand.vmem [shape: f32[2,16,16,4], index: 0, kind: input, shape index: {}]
  %s1 = inlined_call_operand.vmem [shape: bf16[3,12,4], index: 1, kind: input, shape index: {}]
  %s2 = inlined_call_operand.vmem [shape: bf16[3,12,4], index: 2, kind: input, shape index: {}]
  %s3 = inlined_call_operand.vmem [shape: f32[2,16,16,4], index: 3, kind: output, shape index: {}]
  %s4 = sld [smem:[#allocation0]]
  $region45: #{tpu_custom_call.1} parent=0
    _
  %s6 = ssub.s32 1, %s4
  %s7 = scalar_select 0, %s6, %s4
  loop: start=0, step=1, limit=4
  $region2: #{tpu_custom_call.1} parent=0 // loop_pre_header
    _
  $region3: #{tpu_custom_call.1} parent=0 // loop_header
    %s9 = sphi 0, %s13
    %p10 = scmp.ge.s32.totalorder %s9, 4
    %s19 = sphi 0, %s21
    %s22 = sphi 0, %s19
    %s23 = sphi 0, %s22
    %s39 = sphi 0, %s23
    %s43 = sphi 0, %s43
    %s45 = sphi 0, %s43
    %s46 = sphi 0, %s45
    %s60 = sphi 0, %s46
    %s64 = sphi 0, %s64
    %s66 = sphi 0, %s64
    %s67 = sphi 0, %s66
    %s81 = sphi 0, %s67
    %s87 = sphi 0, %s89
    %s90 = sphi 0, %s87
    %s91 = sphi 0, %s90
    %s107 = sphi 0, %s91
  $region4: #{tpu_custom_call.1} parent=0 // loop_header_branch
    %12 = sbr.rel (%p10) target = $region8
  $region5: #{tpu_custom_call.1} parent=0 // loop_body
    %s14 = ssub.s32 %s9, 1
    %s15 = ssub.s32 %s9, 2
    %s16 = sadd.s32 %s9, 1
    %s17 = ssub.s32 %s9, %s16
    %p18 = scmp.eq.s32.totalorder %s17, 0
    %s20 = sadd.s32 %s19, 1
    %s21 = scalar_select %p18, %s19, %s20
    %p24 = pneg %p18
    %p25 = scmp.eq.s32.totalorder %s9, 1
    %p26 = por %p24, %p25
    %p27 = scmp.ne.s32.totalorder %s19, %s22
    %p28 = scmp.eq.s32.totalorder %s9, 0
    %p29 = por %p27, %p28
    %p30 = scmp.ne.s32.totalorder %s19, %s22
    %p31 = scmp.eq.s32.totalorder %s14, 1
    %p32 = por %p30, %p31
    %p33 = scmp.ne.s32.totalorder %s22, %s23
    %p34 = scmp.eq.s32.totalorder %s14, 0
    %p35 = por %p33, %p34
    %p36 = scmp.ne.s32.totalorder %s22, %s23
    %p37 = scmp.eq.s32.totalorder %s15, 1
    %p38 = por %p36, %p37
    %p40 = scmp.ne.s32.totalorder %s23, %s39
    %p41 = scmp.eq.s32.totalorder %s15, 0
    %p42 = por %p40, %p41
    %s44 = sadd.s32 %s43, 1
    %p47 = scmp.eq.s32.totalorder %s9, 1
    %p48 = scmp.ne.s32.totalorder %s43, %s45
    %p49 = scmp.eq.s32.totalorder %s9, 0
    %p50 = por %p48, %p49
    %p51 = scmp.ne.s32.totalorder %s43, %s45
    %p52 = scmp.eq.s32.totalorder %s14, 1
    %p53 = por %p51, %p52
    %p54 = scmp.ne.s32.totalorder %s45, %s46
    %p55 = scmp.eq.s32.totalorder %s14, 0
    %p56 = por %p54, %p55
    %p57 = scmp.ne.s32.totalorder %s45, %s46
    %p58 = scmp.eq.s32.totalorder %s15, 1
    %p59 = por %p57, %p58
    %p61 = scmp.ne.s32.totalorder %s46, %s60
    %p62 = scmp.eq.s32.totalorder %s15, 0
    %p63 = por %p61, %p62
    %s65 = sadd.s32 %s64, 1
    %p68 = scmp.eq.s32.totalorder %s9, 1
    %p69 = scmp.ne.s32.totalorder %s64, %s66
    %p70 = scmp.eq.s32.totalorder %s9, 0
    %p71 = por %p69, %p70
    %p72 = scmp.ne.s32.totalorder %s64, %s66
    %p73 = scmp.eq.s32.totalorder %s14, 1
    %p74 = por %p72, %p73
    %p75 = scmp.ne.s32.totalorder %s66, %s67
    %p76 = scmp.eq.s32.totalorder %s14, 0
    %p77 = por %p75, %p76
    %p78 = scmp.ne.s32.totalorder %s66, %s67
    %p79 = scmp.eq.s32.totalorder %s15, 1
    %p80 = por %p78, %p79
    %p82 = scmp.ne.s32.totalorder %s67, %s81
    %p83 = scmp.eq.s32.totalorder %s15, 0
    %p84 = por %p82, %p83
    %s85 = ssub.s32 %s9, %s16
    %p86 = scmp.eq.s32.totalorder %s85, 0
    %s88 = sadd.s32 %s87, 1
    %s89 = scalar_select %p86, %s87, %s88
    %p92 = pneg %p86
    %p93 = scmp.eq.s32.totalorder %s9, 1
    %p94 = por %p92, %p93
    %p95 = scmp.ne.s32.totalorder %s87, %s90
    %p96 = scmp.eq.s32.totalorder %s9, 0
    %p97 = por %p95, %p96
    %p98 = scmp.ne.s32.totalorder %s87, %s90
    %p99 = scmp.eq.s32.totalorder %s14, 1
    %p100 = por %p98, %p99
    %p101 = scmp.ne.s32.totalorder %s90, %s91
    %p102 = scmp.eq.s32.totalorder %s14, 0
    %p103 = por %p101, %p102
    %p104 = scmp.ne.s32.totalorder %s90, %s91
    %p105 = scmp.eq.s32.totalorder %s15, 1
    %p106 = por %p104, %p105
    %p108 = scmp.ne.s32.totalorder %s91, %s107
    %p109 = scmp.eq.s32.totalorder %s15, 0
    %p110 = por %p108, %p109
    %p111 = scmp.le.s32.totalorder 1, %s9
    %p112 = scmp.lt.s32.totalorder %s9, 3
    %p113 = pnand %p111, %p112
    %p114 = pneg %p113
    // Predicated region
    $region9: #{tpu_custom_call.1} parent=5 // pred_check
      _
    $region10: #{tpu_custom_call.1} parent=5 // pred_check_branch
      %116 = sbr.rel (%p113) target = $region12
    $region11: #{tpu_custom_call.1} parent=5 // pred_region
      %s117 = ssub.s32 %s9, 1
      // Predicated region
      $region13: #{tpu_custom_call.1} parent=11 // pred_check
        %p118 = pneg %p56
      $region14: #{tpu_custom_call.1} parent=11 // pred_check_branch
        %120 = sbr.rel (%p118) target = $region16
      $region15: #{tpu_custom_call.1} parent=11 // pred_region
        _
      $region16: #{tpu_custom_call.1} parent=11 // pred_fallthru
        _
      // Predicated region
      $region17: #{tpu_custom_call.1} parent=11 // pred_check
        %p121 = pneg %p77
      $region18: #{tpu_custom_call.1} parent=11 // pred_check_branch
        %123 = sbr.rel (%p121) target = $region20
      $region19: #{tpu_custom_call.1} parent=11 // pred_region
        _
      $region20: #{tpu_custom_call.1} parent=11 // pred_fallthru
        _
    $region12: #{tpu_custom_call.1} parent=5 // pred_fallthru
      _
    %p124 = scmp.lt.s32.totalorder %s9, 2
    // Predicated region
    $region21: #{tpu_custom_call.1} parent=5 // pred_check
      %p125 = pneg %p124
    $region22: #{tpu_custom_call.1} parent=5 // pred_check_branch
      %127 = sbr.rel (%p125) target = $region24
    $region23: #{tpu_custom_call.1} parent=5 // pred_region
      // Predicated region
      $region25: #{tpu_custom_call.1} parent=23 // pred_check
        %p128 = pneg %p29
      $region26: #{tpu_custom_call.1} parent=23 // pred_check_branch
        %130 = sbr.rel (%p128) target = $region28
      $region27: #{tpu_custom_call.1} parent=23 // pred_region
        %p131 = scmp.lt.s32.totalorder %s9, 1
        %s132 = scalar_select %p131, %s9, 1
        %s133 = smul.addr %s132, 32
        %s134 = smul.addr %s133, 8
        %s135 = scalar_lea.vmem %s0, %s134
      $region28: #{tpu_custom_call.1} parent=23 // pred_fallthru
        _
    $region24: #{tpu_custom_call.1} parent=5 // pred_fallthru
      _
    %p136 = scmp.le.s32.totalorder 1, %s9
    %p137 = scmp.lt.s32.totalorder %s9, 3
    %p138 = pnand %p136, %p137
    %p139 = pneg %p138
    // Predicated region
    $region29: #{tpu_custom_call.1} parent=5 // pred_check
      _
    $region30: #{tpu_custom_call.1} parent=5 // pred_check_branch
      %141 = sbr.rel (%p138) target = $region32
    $region31: #{tpu_custom_call.1} parent=5 // pred_region
      %s142 = ssub.s32 %s9, 1
      %p143 = scmp.lt.s32.totalorder %s14, 1
      %s144 = scalar_select %p143, %s14, 1
      %s145 = smul.addr %s144, 32
      %s146 = smul.addr %s145, 8
      %s147 = scalar_lea.vmem %s0, %s146
      %p148 = pneg %p35
      %p149 = pneg %p32
      %p150 = pneg %p56
      %p151 = pneg %p53
      %p152 = pneg %p77
      %p153 = pneg %p74
      %p154 = pneg %p103
      %p155 = pneg %p100
      %p156 = scmp.lt.s32.totalorder %s14, 1
      %s157 = scalar_select %p156, %s14, 1
      %s158 = smul.addr %s157, 32
      %s159 = smul.addr %s158, 8
      %s160 = scalar_lea.vmem %s3, %s159
      %p161 = scmp.lt.s32.totalorder %s14, 1
      %s162 = scalar_select %p161, %s14, 1
      %s163 = smul.addr %s162, 32
      %s164 = smul.addr %s163, 8
      %s165 = scalar_lea.vmem %s0, %s164
      %p166 = scmp.lt.s32.totalorder %s14, 1
      %s167 = scalar_select %p166, %s14, 1
      %s168 = smul.addr %s167, 32
      %s169 = smul.addr %s168, 8
      %s170 = scalar_lea.vmem %s3, %s169
      %v172 = vld [vmem:[%s165] sm:$0xff]
      %v173 = vld [vmem:[%s165 + $0x8] sm:$0xff]
      %v174 = vld [vmem:[%s165 + $0x10] sm:$0xff]
      %v175 = vld [vmem:[%s165 + $0x18] sm:$0xff]
      %v176 = vld [vmem:[%s165 + $0x20] sm:$0xff]
      %v177 = vld [vmem:[%s165 + $0x28] sm:$0xff]
      %v178 = vld [vmem:[%s165 + $0x30] sm:$0xff]
      %v179 = vld [vmem:[%s165 + $0x38] sm:$0xff]
      %v180 = vld [vmem:[%s165 + $0x40] sm:$0xff]
      %v181 = vld [vmem:[%s165 + $0x48] sm:$0xff]
      %v182 = vld [vmem:[%s165 + $0x50] sm:$0xff]
      %v183 = vld [vmem:[%s165 + $0x58] sm:$0xff]
      %v184 = vld [vmem:[%s165 + $0x60] sm:$0xff]
      %v185 = vld [vmem:[%s165 + $0x68] sm:$0xff]
      %v186 = vld [vmem:[%s165 + $0x70] sm:$0xff]
      %v187 = vld [vmem:[%s165 + $0x78] sm:$0xff]
      %v188 = vld [vmem:[%s165 + $0x80] sm:$0xff]
      %v189 = vld [vmem:[%s165 + $0x88] sm:$0xff]
      %v190 = vld [vmem:[%s165 + $0x90] sm:$0xff]
      %v191 = vld [vmem:[%s165 + $0x98] sm:$0xff]
      %v192 = vld [vmem:[%s165 + $0xa0] sm:$0xff]
      %v193 = vld [vmem:[%s165 + $0xa8] sm:$0xff]
      %v194 = vld [vmem:[%s165 + $0xb0] sm:$0xff]
      %v195 = vld [vmem:[%s165 + $0xb8] sm:$0xff]
      %v196 = vld [vmem:[%s165 + $0xc0] sm:$0xff]
      %v197 = vld [vmem:[%s165 + $0xc8] sm:$0xff]
      %v198 = vld [vmem:[%s165 + $0xd0] sm:$0xff]
      %v199 = vld [vmem:[%s165 + $0xd8] sm:$0xff]
      %v200 = vld [vmem:[%s165 + $0xe0] sm:$0xff]
      %v201 = vld [vmem:[%s165 + $0xe8] sm:$0xff]
      %v202 = vld [vmem:[%s165 + $0xf0] sm:$0xff]
      %v203 = vld [vmem:[%s165 + $0xf8] sm:$0xff]
      %v204 = vpack.c.bf16 %v173, %v172
      %v205 = vpack.c.bf16 %v175, %v174
      %v206 = vpack.c.bf16 %v177, %v176
      %v207 = vpack.c.bf16 %v179, %v178
      %v208 = vpack.c.bf16 %v181, %v180
      %v209 = vpack.c.bf16 %v183, %v182
      %v210 = vpack.c.bf16 %v185, %v184
      %v211 = vpack.c.bf16 %v187, %v186
      %v212 = vpack.c.bf16 %v189, %v188
      %v213 = vpack.c.bf16 %v191, %v190
      %v214 = vpack.c.bf16 %v193, %v192
      %v215 = vpack.c.bf16 %v195, %v194
      %v216 = vpack.c.bf16 %v197, %v196
      %v217 = vpack.c.bf16 %v199, %v198
      %v218 = vpack.c.bf16 %v201, %v200
      %v219 = vpack.c.bf16 %v203, %v202
      %v220 = vld [vmem:[%s1] sm:$0xf]
      %v221 = vld [vmem:[%s1 + $0x4] sm:$0x3]
      %v222 = vld [vmem:[%s1 + $0x8] sm:$0xf]
      %v223 = vld [vmem:[%s1 + $0xc] sm:$0x3]
      %v224 = vld [vmem:[%s1 + $0x10] sm:$0xf]
      %v225 = vld [vmem:[%s1 + $0x14] sm:$0x3]
      %v227 = vshrl.u32 %v204, 16
      %v230 = vshrl.u32 %v205, 16
      %v233 = vshrl.u32 %v206, 16
      %v236 = vshrl.u32 %v207, 16
      %v239 = vshrl.u32 %v208, 16
      %v242 = vshrl.u32 %v209, 16
      %v245 = vshrl.u32 %v210, 16
      %v248 = vshrl.u32 %v211, 16
      %v251 = vshrl.u32 %v212, 16
      %v254 = vshrl.u32 %v213, 16
      %v257 = vshrl.u32 %v214, 16
      %v260 = vshrl.u32 %v215, 16
      %v263 = vshrl.u32 %v216, 16
      %v266 = vshrl.u32 %v217, 16
      %v269 = vshrl.u32 %v218, 16
      %v272 = vshrl.u32 %v219, 16
      %v290 = vrot.slane %v227, 7
      %v291 = vshll.u32 %v204, 16
      %v293 = vor.u32 %v290, %v291
      %v294 = vrot.slane %v230, 7
      %v295 = vshll.u32 %v205, 16
      %v297 = vor.u32 %v294, %v295
      %v298 = vrot.slane %v233, 7
      %v299 = vshll.u32 %v206, 16
      %v301 = vor.u32 %v298, %v299
      %v302 = vrot.slane %v236, 7
      %v303 = vshll.u32 %v207, 16
      %v305 = vor.u32 %v302, %v303
      %v306 = vrot.slane %v239, 7
      %v307 = vshll.u32 %v208, 16
      %v309 = vor.u32 %v306, %v307
      %v310 = vrot.slane %v242, 7
      %v311 = vshll.u32 %v209, 16
      %v313 = vor.u32 %v310, %v311
      %v314 = vrot.slane %v245, 7
      %v315 = vshll.u32 %v210, 16
      %v317 = vor.u32 %v314, %v315
      %v318 = vrot.slane %v248, 7
      %v319 = vshll.u32 %v211, 16
      %v321 = vor.u32 %v318, %v319
      %v322 = vrot.slane %v251, 7
      %v323 = vshll.u32 %v212, 16
      %v325 = vor.u32 %v322, %v323
      %v326 = vrot.slane %v254, 7
      %v327 = vshll.u32 %v213, 16
      %v329 = vor.u32 %v326, %v327
      %v330 = vrot.slane %v257, 7
      %v331 = vshll.u32 %v214, 16
      %v333 = vor.u32 %v330, %v331
      %v334 = vrot.slane %v260, 7
      %v335 = vshll.u32 %v215, 16
      %v337 = vor.u32 %v334, %v335
      %v338 = vrot.slane %v263, 7
      %v339 = vshll.u32 %v216, 16
      %v341 = vor.u32 %v338, %v339
      %v342 = vrot.slane %v266, 7
      %v343 = vshll.u32 %v217, 16
      %v345 = vor.u32 %v342, %v343
      %v346 = vrot.slane %v269, 7
      %v347 = vshll.u32 %v218, 16
      %v349 = vor.u32 %v346, %v347
      %v350 = vrot.slane %v272, 7
      %v351 = vshll.u32 %v219, 16
      %v353 = vor.u32 %v350, %v351
      %v386 = vrot.slane %v291, 7
      %v387 = vrot.slane %v295, 7
      %v388 = vrot.slane %v299, 7
      %v389 = vrot.slane %v303, 7
      %v390 = vrot.slane %v307, 7
      %v391 = vrot.slane %v311, 7
      %v392 = vrot.slane %v315, 7
      %v393 = vrot.slane %v319, 7
      %v394 = vrot.slane %v323, 7
      %v395 = vrot.slane %v327, 7
      %v396 = vrot.slane %v331, 7
      %v397 = vrot.slane %v335, 7
      %v398 = vrot.slane %v339, 7
      %v399 = vrot.slane %v343, 7
      %v400 = vrot.slane %v347, 7
      %v401 = vrot.slane %v351, 7
      %vm418 = vcmask 1040384
      %vm419 = vsmask.f32 256
      %vm420 = vmand %vm418, %vm419
      %v421 = vsel %vm420, %v227, %v293
      %v422 = vsel %vm420, %v230, %v297
      %v423 = vsel %vm420, %v233, %v301
      %v424 = vsel %vm420, %v236, %v305
      %v425 = vsel %vm420, %v239, %v309
      %v426 = vsel %vm420, %v242, %v313
      %v427 = vsel %vm420, %v245, %v317
      %v428 = vsel %vm420, %v248, %v321
      %v429 = vsel %vm420, %v251, %v325
      %v430 = vsel %vm420, %v254, %v329
      %v431 = vsel %vm420, %v257, %v333
      %v432 = vsel %vm420, %v260, %v337
      %v433 = vsel %vm420, %v263, %v341
      %v434 = vsel %vm420, %v266, %v345
      %v435 = vsel %vm420, %v269, %v349
      %v436 = vsel %vm420, %v272, %v353
      %v437 = vsel %vm420, %v290, %v386
      %v438 = vsel %vm420, %v294, %v387
      %v439 = vsel %vm420, %v298, %v388
      %v440 = vsel %vm420, %v302, %v389
      %v441 = vsel %vm420, %v306, %v390
      %v442 = vsel %vm420, %v310, %v391
      %v443 = vsel %vm420, %v314, %v392
      %v444 = vsel %vm420, %v318, %v393
      %v445 = vsel %vm420, %v322, %v394
      %v446 = vsel %vm420, %v326, %v395
      %v447 = vsel %vm420, %v330, %v396
      %v448 = vsel %vm420, %v334, %v397
      %v449 = vsel %vm420, %v338, %v398
      %v450 = vsel %vm420, %v342, %v399
      %v451 = vsel %vm420, %v346, %v400
      %v452 = vsel %vm420, %v350, %v401
      %vm453 = vsmask.f32 7424
      %v455 = vshrl.u32 %v422, 16
      %v457 = vshll.u32 %v422, 16
      %v459 = vrot.slane %v457, 1
      %v460 = vor.u32 %v455, %v459
      %v462 = vshll.u32 %v438, 16
      %v464 = vrot.slane %v462, 1
      %v465 = vsel %vm453, %v460, %v464
      %v467 = vshrl.u32 %v421, 16
      %v469 = vshll.u32 %v421, 16
      %v471 = vrot.slane %v469, 1
      %v472 = vor.u32 %v467, %v471
      %v474 = vshll.u32 %v437, 16
      %v476 = vrot.slane %v474, 1
      %v477 = vsel %vm453, %v472, %v476
      %v479 = vshrl.u32 %v423, 16
      %v481 = vshll.u32 %v423, 16
      %v483 = vrot.slane %v481, 1
      %v484 = vor.u32 %v479, %v483
      %v486 = vshll.u32 %v439, 16
      %v488 = vrot.slane %v486, 1
      %v489 = vsel %vm453, %v484, %v488
      %v491 = vshrl.u32 %v424, 16
      %v493 = vshll.u32 %v424, 16
      %v495 = vrot.slane %v493, 1
      %v496 = vor.u32 %v491, %v495
      %v498 = vshll.u32 %v440, 16
      %v500 = vrot.slane %v498, 1
      %v501 = vsel %vm453, %v496, %v500
      %v503 = vshrl.u32 %v425, 16
      %v505 = vshll.u32 %v425, 16
      %v507 = vrot.slane %v505, 1
      %v508 = vor.u32 %v503, %v507
      %v510 = vshll.u32 %v441, 16
      %v512 = vrot.slane %v510, 1
      %v513 = vsel %vm453, %v508, %v512
      %v515 = vshrl.u32 %v426, 16
      %v517 = vshll.u32 %v426, 16
      %v519 = vrot.slane %v517, 1
      %v520 = vor.u32 %v515, %v519
      %v522 = vshll.u32 %v442, 16
      %v524 = vrot.slane %v522, 1
      %v525 = vsel %vm453, %v520, %v524
      %v527 = vshrl.u32 %v427, 16
      %v529 = vshll.u32 %v427, 16
      %v531 = vrot.slane %v529, 1
      %v532 = vor.u32 %v527, %v531
      %v534 = vshll.u32 %v443, 16
      %v536 = vrot.slane %v534, 1
      %v537 = vsel %vm453, %v532, %v536
      %v539 = vshrl.u32 %v428, 16
      %v541 = vshll.u32 %v428, 16
      %v543 = vrot.slane %v541, 1
      %v544 = vor.u32 %v539, %v543
      %v546 = vshll.u32 %v444, 16
      %v548 = vrot.slane %v546, 1
      %v549 = vsel %vm453, %v544, %v548
      %v551 = vshrl.u32 %v429, 16
      %v553 = vshll.u32 %v429, 16
      %v555 = vrot.slane %v553, 1
      %v556 = vor.u32 %v551, %v555
      %v558 = vshll.u32 %v445, 16
      %v560 = vrot.slane %v558, 1
      %v561 = vsel %vm453, %v556, %v560
      %v563 = vshrl.u32 %v430, 16
      %v565 = vshll.u32 %v430, 16
      %v567 = vrot.slane %v565, 1
      %v568 = vor.u32 %v563, %v567
      %v570 = vshll.u32 %v446, 16
      %v572 = vrot.slane %v570, 1
      %v573 = vsel %vm453, %v568, %v572
      %v575 = vshrl.u32 %v431, 16
      %v577 = vshll.u32 %v431, 16
      %v579 = vrot.slane %v577, 1
      %v580 = vor.u32 %v575, %v579
      %v582 = vshll.u32 %v447, 16
      %v584 = vrot.slane %v582, 1
      %v585 = vsel %vm453, %v580, %v584
      %v587 = vshrl.u32 %v432, 16
      %v589 = vshll.u32 %v432, 16
      %v591 = vrot.slane %v589, 1
      %v592 = vor.u32 %v587, %v591
      %v594 = vshll.u32 %v448, 16
      %v596 = vrot.slane %v594, 1
      %v597 = vsel %vm453, %v592, %v596
      %v599 = vshrl.u32 %v433, 16
      %v601 = vshll.u32 %v433, 16
      %v603 = vrot.slane %v601, 1
      %v604 = vor.u32 %v599, %v603
      %v606 = vshll.u32 %v449, 16
      %v608 = vrot.slane %v606, 1
      %v609 = vsel %vm453, %v604, %v608
      %v611 = vshrl.u32 %v434, 16
      %v613 = vshll.u32 %v434, 16
      %v615 = vrot.slane %v613, 1
      %v616 = vor.u32 %v611, %v615
      %v618 = vshll.u32 %v450, 16
      %v620 = vrot.slane %v618, 1
      %v621 = vsel %vm453, %v616, %v620
      %v623 = vshrl.u32 %v435, 16
      %v625 = vshll.u32 %v435, 16
      %v627 = vrot.slane %v625, 1
      %v628 = vor.u32 %v623, %v627
      %v630 = vshll.u32 %v451, 16
      %v632 = vrot.slane %v630, 1
      %v633 = vsel %vm453, %v628, %v632
      %634 = vrot.lane.b32.xlu0 %v465, 4
      %v635 = vpop.permute.xlu0 %634
      %636 = vrot.lane.b32.xlu0 %v477, 4
      %v637 = vpop.permute.xlu0 %636
      %638 = vrot.lane.b32.xlu0 %v489, 4
      %v639 = vpop.permute.xlu0 %638
      %640 = vrot.lane.b32.xlu0 %v501, 4
      %v641 = vpop.permute.xlu0 %640
      %642 = vrot.lane.b32.xlu0 %v513, 4
      %v643 = vpop.permute.xlu0 %642
      %644 = vrot.lane.b32.xlu0 %v525, 4
      %v645 = vpop.permute.xlu0 %644
      %646 = vrot.lane.b32.xlu0 %v537, 4
      %v647 = vpop.permute.xlu0 %646
      %648 = vrot.lane.b32.xlu0 %v549, 4
      %v649 = vpop.permute.xlu0 %648
      %650 = vrot.lane.b32.xlu0 %v561, 4
      %v651 = vpop.permute.xlu0 %650
      %652 = vrot.lane.b32.xlu0 %v573, 4
      %v653 = vpop.permute.xlu0 %652
      %654 = vrot.lane.b32.xlu0 %v585, 4
      %v655 = vpop.permute.xlu0 %654
      %656 = vrot.lane.b32.xlu0 %v597, 4
      %v657 = vpop.permute.xlu0 %656
      %658 = vrot.lane.b32.xlu0 %v609, 4
      %v659 = vpop.permute.xlu0 %658
      %660 = vrot.lane.b32.xlu0 %v621, 4
      %v661 = vpop.permute.xlu0 %660
      %662 = vrot.lane.b32.xlu0 %v633, 4
      %v663 = vpop.permute.xlu0 %662
      %vm694 = vcmask 1046528
      %v695 = vrot.slane %v422, 1
      %v696 = vrot.slane %v438, 1
      %v697 = vsel %vm694, %v695, %v696
      %v698 = vrot.slane %v421, 1
      %v699 = vrot.slane %v437, 1
      %v700 = vsel %vm694, %v698, %v699
      %v701 = vrot.slane %v423, 1
      %v702 = vrot.slane %v439, 1
      %v703 = vsel %vm694, %v701, %v702
      %v704 = vrot.slane %v424, 1
      %v705 = vrot.slane %v440, 1
      %v706 = vsel %vm694, %v704, %v705
      %v707 = vrot.slane %v425, 1
      %v708 = vrot.slane %v441, 1
      %v709 = vsel %vm694, %v707, %v708
      %v710 = vrot.slane %v426, 1
      %v711 = vrot.slane %v442, 1
      %v712 = vsel %vm694, %v710, %v711
      %v713 = vrot.slane %v427, 1
      %v714 = vrot.slane %v443, 1
      %v715 = vsel %vm694, %v713, %v714
      %v716 = vrot.slane %v428, 1
      %v717 = vrot.slane %v444, 1
      %v718 = vsel %vm694, %v716, %v717
      %v719 = vrot.slane %v429, 1
      %v720 = vrot.slane %v445, 1
      %v721 = vsel %vm694, %v719, %v720
      %v722 = vrot.slane %v430, 1
      %v723 = vrot.slane %v446, 1
      %v724 = vsel %vm694, %v722, %v723
      %v725 = vrot.slane %v431, 1
      %v726 = vrot.slane %v447, 1
      %v727 = vsel %vm694, %v725, %v726
      %v728 = vrot.slane %v432, 1
      %v729 = vrot.slane %v448, 1
      %v730 = vsel %vm694, %v728, %v729
      %v731 = vrot.slane %v433, 1
      %v732 = vrot.slane %v449, 1
      %v733 = vsel %vm694, %v731, %v732
      %v734 = vrot.slane %v434, 1
      %v735 = vrot.slane %v450, 1
      %v736 = vsel %vm694, %v734, %v735
      %v737 = vrot.slane %v435, 1
      %v738 = vrot.slane %v451, 1
      %v739 = vsel %vm694, %v737, %v738
      %740 = vrot.lane.b32.xlu0 %v697, 8
      %v741 = vpop.permute.xlu0 %740
      %742 = vrot.lane.b32.xlu0 %v700, 8
      %v743 = vpop.permute.xlu0 %742
      %744 = vrot.lane.b32.xlu0 %v703, 8
      %v745 = vpop.permute.xlu0 %744
      %746 = vrot.lane.b32.xlu0 %v706, 8
      %v747 = vpop.permute.xlu0 %746
      %748 = vrot.lane.b32.xlu0 %v709, 8
      %v749 = vpop.permute.xlu0 %748
      %750 = vrot.lane.b32.xlu0 %v712, 8
      %v751 = vpop.permute.xlu0 %750
      %752 = vrot.lane.b32.xlu0 %v715, 8
      %v753 = vpop.permute.xlu0 %752
      %754 = vrot.lane.b32.xlu0 %v718, 8
      %v755 = vpop.permute.xlu0 %754
      %756 = vrot.lane.b32.xlu0 %v721, 8
      %v757 = vpop.permute.xlu0 %756
      %758 = vrot.lane.b32.xlu0 %v724, 8
      %v759 = vpop.permute.xlu0 %758
      %760 = vrot.lane.b32.xlu0 %v727, 8
      %v761 = vpop.permute.xlu0 %760
      %762 = vrot.lane.b32.xlu0 %v730, 8
      %v763 = vpop.permute.xlu0 %762
      %764 = vrot.lane.b32.xlu0 %v733, 8
      %v765 = vpop.permute.xlu0 %764
      %766 = vrot.lane.b32.xlu0 %v736, 8
      %v767 = vpop.permute.xlu0 %766
      %768 = vrot.lane.b32.xlu0 %v739, 8
      %v769 = vpop.permute.xlu0 %768
      %vm770 = vcmask 31744
      %v772 = vsel %vm770, %v422, %v635
      %v774 = vsel %vm770, %v421, %v637
      %v776 = vsel %vm770, %v423, %v639
      %v778 = vsel %vm770, %v424, %v641
      %v780 = vsel %vm770, %v425, %v643
      %v782 = vsel %vm770, %v426, %v645
      %v784 = vsel %vm770, %v427, %v647
      %v786 = vsel %vm770, %v428, %v649
      %v788 = vsel %vm770, %v429, %v651
      %v790 = vsel %vm770, %v430, %v653
      %v792 = vsel %vm770, %v431, %v655
      %v794 = vsel %vm770, %v432, %v657
      %v796 = vsel %vm770, %v433, %v659
      %v798 = vsel %vm770, %v434, %v661
      %v800 = vsel %vm770, %v435, %v663
      %vm801 = vcmask 64512
      %v803 = vsel %vm801, %v772, %v741
      %v805 = vsel %vm801, %v774, %v743
      %v807 = vsel %vm801, %v776, %v745
      %v809 = vsel %vm801, %v778, %v747
      %v811 = vsel %vm801, %v780, %v749
      %v813 = vsel %vm801, %v782, %v751
      %v815 = vsel %vm801, %v784, %v753
      %v817 = vsel %vm801, %v786, %v755
      %v819 = vsel %vm801, %v788, %v757
      %v821 = vsel %vm801, %v790, %v759
      %v823 = vsel %vm801, %v792, %v761
      %v825 = vsel %vm801, %v794, %v763
      %v827 = vsel %vm801, %v796, %v765
      %v829 = vsel %vm801, %v798, %v767
      %v831 = vsel %vm801, %v800, %v769
      %v833 = vshrl.u32 %v436, 16
      %v835 = vshll.u32 %v436, 16
      %v837 = vrot.slane %v835, 1
      %v838 = vor.u32 %v833, %v837
      %v840 = vshll.u32 %v452, 16
      %v842 = vrot.slane %v840, 1
      %v843 = vsel %vm453, %v838, %v842
      %844 = vrot.lane.b32.xlu0 %v843, 4
      %v845 = vpop.permute.xlu0 %844
      %v848 = vrot.slane %v436, 1
      %v849 = vrot.slane %v452, 1
      %v850 = vsel %vm694, %v848, %v849
      %851 = vrot.lane.b32.xlu0 %v850, 8
      %v852 = vpop.permute.xlu0 %851
      %v854 = vsel %vm770, %v436, %v845
      %v856 = vsel %vm801, %v854, %v852
      %v859 = vunpack.c.l.b16 %v222
      %v860 = vunpack.c.l.b16 %v223
      %v861 = vpack.c.b16 %v860, %v859
      %vm862 = vcmask 97280
      %v863 = vsel %vm862, %v805, 0
      %v865 = vsel %vm862, %v803, 0
      %v867 = vsel %vm862, %v807, 0
      %v869 = vsel %vm862, %v809, 0
      %v871 = vsel %vm862, %v811, 0
      %v873 = vsel %vm862, %v813, 0
      %v875 = vsel %vm862, %v815, 0
      %v877 = vsel %vm862, %v817, 0
      %v879 = vsel %vm862, %v819, 0
      %v881 = vsel %vm862, %v821, 0
      %v883 = vsel %vm862, %v823, 0
      %v885 = vsel %vm862, %v825, 0
      %v887 = vsel %vm862, %v827, 0
      %v889 = vsel %vm862, %v829, 0
      %v891 = vsel %vm862, %v831, 0
      %v893 = vsel %vm862, %v856, 0
      %vm895 = vcmask 1045504
      %v897 = vsel %vm895, %v861, 0
      %899 = vmatprep.subr.bf16.mxu0 0
      %900 = vmatpush1.bf16.msra.mxu0 0
      %901 = vmatprep.subr.bf16.mxu0 0
      %902 = vmatpush1.bf16.msra.mxu0 0
      %903 = vmatprep.subr.bf16.mxu0 0
      %904 = vmatpush1.bf16.msra.mxu0 0
      %905 = vmatprep.subr.bf16.mxu0 0
      %906 = vmatpush1.bf16.msra.mxu0 0
      %907 = vmatprep.subr.bf16.mxu0 0
      %908 = vmatpush1.bf16.msra.mxu0 0
      %909 = vmatprep.subr.bf16.mxu0 0
      %910 = vmatpush1.bf16.msra.mxu0 0
      %911 = vmatprep.subr.bf16.mxu0 0
      %912 = vmatpush1.bf16.msra.mxu0 0
      %913 = vmatprep.subr.bf16.mxu0 0
      %914 = vmatpush1.bf16.msra.mxu0 %v897
      %915 = vmatprep.subr.bf16.mxu0 0
      %916 = vmatpush2.bf16.msra.mxu0 0
      %917 = vmatprep.subr.bf16.mxu0 0
      %918 = vmatpush2.bf16.msra.mxu0 0
      %919 = vmatprep.subr.bf16.mxu0 0
      %920 = vmatpush2.bf16.msra.mxu0 0
      %921 = vmatprep.subr.bf16.mxu0 0
      %922 = vmatpush2.bf16.msra.mxu0 0
      %923 = vmatprep.subr.bf16.mxu0 0
      %924 = vmatpush2.bf16.msra.mxu0 0
      %925 = vmatprep.subr.bf16.mxu0 0
      %926 = vmatpush2.bf16.msra.mxu0 0
      %927 = vmatprep.subr.bf16.mxu0 0
      %928 = vmatpush2.bf16.msra.mxu0 0
      %929 = vmatprep.subr.bf16.mxu0 0
      %930 = vmatpush2.bf16.msra.mxu0 0
      %931 = vmatprep.mubr.bf16.mxu0 0
      %932 = vmatmul.mubr.bf16.gmra.mxu0 %v863
      %v933 = vpop.f32.mrf.mxu0
      %v934 = vadd.f32 0.0, %v933
      %v935 = vpop.f32.mrf.mxu0
      %v936 = vpop.f32.mrf.mxu0
      %v937 = vadd.f32 0.0, %v936
      %v938 = vpop.f32.mrf.mxu0
      %939 = vmatprep.mubr.bf16.mxu0 0
      %940 = vmatmul.mubr.bf16.gmra.mxu0 %v865
      %v941 = vpop.f32.mrf.mxu0
      %v942 = vadd.f32 0.0, %v941
      %v943 = vpop.f32.mrf.mxu0
      %v944 = vpop.f32.mrf.mxu0
      %v945 = vadd.f32 0.0, %v944
      %v946 = vpop.f32.mrf.mxu0
      %947 = vmatprep.mubr.bf16.mxu0 0
      %948 = vmatmul.mubr.bf16.gmra.mxu0 %v867
      %v949 = vpop.f32.mrf.mxu0
      %v950 = vadd.f32 0.0, %v949
      %v951 = vpop.f32.mrf.mxu0
      %v952 = vpop.f32.mrf.mxu0
      %v953 = vadd.f32 0.0, %v952
      %v954 = vpop.f32.mrf.mxu0
      %955 = vmatprep.mubr.bf16.mxu0 0
      %956 = vmatmul.mubr.bf16.gmra.mxu0 %v869
      %v957 = vpop.f32.mrf.mxu0
      %v958 = vadd.f32 0.0, %v957
      %v959 = vpop.f32.mrf.mxu0
      %v960 = vpop.f32.mrf.mxu0
      %v961 = vadd.f32 0.0, %v960
      %v962 = vpop.f32.mrf.mxu0
      %963 = vmatprep.mubr.bf16.mxu0 0
      %964 = vmatmul.mubr.bf16.gmra.mxu0 %v871
      %v965 = vpop.f32.mrf.mxu0
      %v966 = vadd.f32 0.0, %v965
      %v967 = vpop.f32.mrf.mxu0
      %v968 = vpop.f32.mrf.mxu0
      %v969 = vadd.f32 0.0, %v968
      %v970 = vpop.f32.mrf.mxu0
      %971 = vmatprep.mubr.bf16.mxu0 0
      %972 = vmatmul.mubr.bf16.gmra.mxu0 %v873
      %v973 = vpop.f32.mrf.mxu0
      %v974 = vadd.f32 0.0, %v973
      %v975 = vpop.f32.mrf.mxu0
      %v976 = vpop.f32.mrf.mxu0
      %v977 = vadd.f32 0.0, %v976
      %v978 = vpop.f32.mrf.mxu0
      %979 = vmatprep.mubr.bf16.mxu0 0
      %980 = vmatmul.mubr.bf16.gmra.mxu0 %v875
      %v981 = vpop.f32.mrf.mxu0
      %v982 = vadd.f32 0.0, %v981
      %v983 = vpop.f32.mrf.mxu0
      %v984 = vpop.f32.mrf.mxu0
      %v985 = vadd.f32 0.0, %v984
      %v986 = vpop.f32.mrf.mxu0
      %987 = vmatprep.mubr.bf16.mxu0 0
      %988 = vmatmul.mubr.bf16.gmra.mxu0 %v877
      %v989 = vpop.f32.mrf.mxu0
      %v990 = vadd.f32 0.0, %v989
      %v991 = vpop.f32.mrf.mxu0
      %v992 = vpop.f32.mrf.mxu0
      %v993 = vadd.f32 0.0, %v992
      %v994 = vpop.f32.mrf.mxu0
      %995 = vmatprep.mubr.bf16.mxu0 0
      %996 = vmatmul.mubr.bf16.gmra.mxu0 %v879
      %v997 = vpop.f32.mrf.mxu0
      %v998 = vadd.f32 0.0, %v997
      %v999 = vpop.f32.mrf.mxu0
      %v1000 = vpop.f32.mrf.mxu0
      %v1001 = vadd.f32 0.0, %v1000
      %v1002 = vpop.f32.mrf.mxu0
      %1003 = vmatprep.mubr.bf16.mxu0 0
      %1004 = vmatmul.mubr.bf16.gmra.mxu0 %v881
      %v1005 = vpop.f32.mrf.mxu0
      %v1006 = vadd.f32 0.0, %v1005
      %v1007 = vpop.f32.mrf.mxu0
      %v1008 = vpop.f32.mrf.mxu0
      %v1009 = vadd.f32 0.0, %v1008
      %v1010 = vpop.f32.mrf.mxu0
      %1011 = vmatprep.mubr.bf16.mxu0 0
      %1012 = vmatmul.mubr.bf16.gmra.mxu0 %v883
      %v1013 = vpop.f32.mrf.mxu0
      %v1014 = vadd.f32 0.0, %v1013
      %v1015 = vpop.f32.mrf.mxu0
      %v1016 = vpop.f32.mrf.mxu0
      %v1017 = vadd.f32 0.0, %v1016
      %v1018 = vpop.f32.mrf.mxu0
      %1019 = vmatprep.mubr.bf16.mxu0 0
      %1020 = vmatmul.mubr.bf16.gmra.mxu0 %v885
      %v1021 = vpop.f32.mrf.mxu0
      %v1022 = vadd.f32 0.0, %v1021
      %v1023 = vpop.f32.mrf.mxu0
      %v1024 = vpop.f32.mrf.mxu0
      %v1025 = vadd.f32 0.0, %v1024
      %v1026 = vpop.f32.mrf.mxu0
      %1027 = vmatprep.mubr.bf16.mxu0 0
      %1028 = vmatmul.mubr.bf16.gmra.mxu0 %v887
      %v1029 = vpop.f32.mrf.mxu0
      %v1030 = vadd.f32 0.0, %v1029
      %v1031 = vpop.f32.mrf.mxu0
      %v1032 = vpop.f32.mrf.mxu0
      %v1033 = vadd.f32 0.0, %v1032
      %v1034 = vpop.f32.mrf.mxu0
      %1035 = vmatprep.mubr.bf16.mxu0 0
      %1036 = vmatmul.mubr.bf16.gmra.mxu0 %v889
      %v1037 = vpop.f32.mrf.mxu0
      %v1038 = vadd.f32 0.0, %v1037
      %v1039 = vpop.f32.mrf.mxu0
      %v1040 = vpop.f32.mrf.mxu0
      %v1041 = vadd.f32 0.0, %v1040
      %v1042 = vpop.f32.mrf.mxu0
      %1043 = vmatprep.mubr.bf16.mxu0 0
      %1044 = vmatmul.mubr.bf16.gmra.mxu0 %v891
      %v1045 = vpop.f32.mrf.mxu0
      %v1046 = vadd.f32 0.0, %v1045
      %v1047 = vpop.f32.mrf.mxu0
      %v1048 = vpop.f32.mrf.mxu0
      %v1049 = vadd.f32 0.0, %v1048
      %v1050 = vpop.f32.mrf.mxu0
      %1051 = vmatprep.mubr.bf16.mxu0 0
      %1052 = vmatmul.mubr.bf16.gmra.mxu0 %v893
      %v1053 = vpop.f32.mrf.mxu0
      %v1054 = vadd.f32 0.0, %v1053
      %v1055 = vpop.f32.mrf.mxu0
      %v1056 = vpop.f32.mrf.mxu0
      %v1057 = vadd.f32 0.0, %v1056
      %v1058 = vpop.f32.mrf.mxu0
      %1059 = vdwg.mxu0
      %v1062 = vunpack.c.l.b16 %v220
      %v1063 = vunpack.c.l.b16 %v221
      %v1064 = vpack.c.b16 %v1063, %v1062
      %v1066 = vsel %vm895, %v1064, 0
      %1068 = vmatprep.subr.bf16.mxu0 0
      %1069 = vmatpush1.bf16.msra.mxu0 0
      %1070 = vmatprep.subr.bf16.mxu0 0
      %1071 = vmatpush1.bf16.msra.mxu0 0
      %1072 = vmatprep.subr.bf16.mxu0 0
      %1073 = vmatpush1.bf16.msra.mxu0 0
      %1074 = vmatprep.subr.bf16.mxu0 0
      %1075 = vmatpush1.bf16.msra.mxu0 0
      %1076 = vmatprep.subr.bf16.mxu0 0
      %1077 = vmatpush1.bf16.msra.mxu0 0
      %1078 = vmatprep.subr.bf16.mxu0 0
      %1079 = vmatpush1.bf16.msra.mxu0 0
      %1080 = vmatprep.subr.bf16.mxu0 0
      %1081 = vmatpush1.bf16.msra.mxu0 0
      %1082 = vmatprep.subr.bf16.mxu0 0
      %1083 = vmatpush1.bf16.msra.mxu0 %v1066
      %1084 = vmatprep.subr.bf16.mxu0 0
      %1085 = vmatpush2.bf16.msra.mxu0 0
      %1086 = vmatprep.subr.bf16.mxu0 0
      %1087 = vmatpush2.bf16.msra.mxu0 0
      %1088 = vmatprep.subr.bf16.mxu0 0
      %1089 = vmatpush2.bf16.msra.mxu0 0
      %1090 = vmatprep.subr.bf16.mxu0 0
      %1091 = vmatpush2.bf16.msra.mxu0 0
      %1092 = vmatprep.subr.bf16.mxu0 0
      %1093 = vmatpush2.bf16.msra.mxu0 0
      %1094 = vmatprep.subr.bf16.mxu0 0
      %1095 = vmatpush2.bf16.msra.mxu0 0
      %1096 = vmatprep.subr.bf16.mxu0 0
      %1097 = vmatpush2.bf16.msra.mxu0 0
      %1098 = vmatprep.subr.bf16.mxu0 0
      %1099 = vmatpush2.bf16.msra.mxu0 0
      %1100 = vmatprep.mubr.bf16.mxu0 0
      %1101 = vmatmul.mubr.bf16.gmra.mxu0 %v865
      %v1102 = vpop.f32.mrf.mxu0
      %v1103 = vadd.f32 %v934, %v1102
      %v1104 = vpop.f32.mrf.mxu0
      %v1105 = vpop.f32.mrf.mxu0
      %v1106 = vadd.f32 %v937, %v1105
      %v1107 = vpop.f32.mrf.mxu0
      %1108 = vmatprep.mubr.bf16.mxu0 0
      %1109 = vmatmul.mubr.bf16.gmra.mxu0 %v863
      %v1110 = vpop.f32.mrf.mxu0
      %v1111 = vadd.f32 %v942, %v1110
      %v1112 = vpop.f32.mrf.mxu0
      %v1113 = vpop.f32.mrf.mxu0
      %v1114 = vadd.f32 %v945, %v1113
      %v1115 = vpop.f32.mrf.mxu0
      %1116 = vmatprep.mubr.bf16.mxu0 0
      %1117 = vmatmul.mubr.bf16.gmra.mxu0 %v865
      %v1118 = vpop.f32.mrf.mxu0
      %v1119 = vadd.f32 %v950, %v1118
      %v1120 = vpop.f32.mrf.mxu0
      %v1121 = vpop.f32.mrf.mxu0
      %v1122 = vadd.f32 %v953, %v1121
      %v1123 = vpop.f32.mrf.mxu0
      %1124 = vmatprep.mubr.bf16.mxu0 0
      %1125 = vmatmul.mubr.bf16.gmra.mxu0 %v867
      %v1126 = vpop.f32.mrf.mxu0
      %v1127 = vadd.f32 %v958, %v1126
      %v1128 = vpop.f32.mrf.mxu0
      %v1129 = vpop.f32.mrf.mxu0
      %v1130 = vadd.f32 %v961, %v1129
      %v1131 = vpop.f32.mrf.mxu0
      %1132 = vmatprep.mubr.bf16.mxu0 0
      %1133 = vmatmul.mubr.bf16.gmra.mxu0 %v869
      %v1134 = vpop.f32.mrf.mxu0
      %v1135 = vadd.f32 %v966, %v1134
      %v1136 = vpop.f32.mrf.mxu0
      %v1137 = vpop.f32.mrf.mxu0
      %v1138 = vadd.f32 %v969, %v1137
      %v1139 = vpop.f32.mrf.mxu0
      %1140 = vmatprep.mubr.bf16.mxu0 0
      %1141 = vmatmul.mubr.bf16.gmra.mxu0 %v871
      %v1142 = vpop.f32.mrf.mxu0
      %v1143 = vadd.f32 %v974, %v1142
      %v1144 = vpop.f32.mrf.mxu0
      %v1145 = vpop.f32.mrf.mxu0
      %v1146 = vadd.f32 %v977, %v1145
      %v1147 = vpop.f32.mrf.mxu0
      %1148 = vmatprep.mubr.bf16.mxu0 0
      %1149 = vmatmul.mubr.bf16.gmra.mxu0 %v873
      %v1150 = vpop.f32.mrf.mxu0
      %v1151 = vadd.f32 %v982, %v1150
      %v1152 = vpop.f32.mrf.mxu0
      %v1153 = vpop.f32.mrf.mxu0
      %v1154 = vadd.f32 %v985, %v1153
      %v1155 = vpop.f32.mrf.mxu0
      %1156 = vmatprep.mubr.bf16.mxu0 0
      %1157 = vmatmul.mubr.bf16.gmra.mxu0 %v875
      %v1158 = vpop.f32.mrf.mxu0
      %v1159 = vadd.f32 %v990, %v1158
      %v1160 = vpop.f32.mrf.mxu0
      %v1161 = vpop.f32.mrf.mxu0
      %v1162 = vadd.f32 %v993, %v1161
      %v1163 = vpop.f32.mrf.mxu0
      %1164 = vmatprep.mubr.bf16.mxu0 0
      %1165 = vmatmul.mubr.bf16.gmra.mxu0 %v877
      %v1166 = vpop.f32.mrf.mxu0
      %v1167 = vadd.f32 %v998, %v1166
      %v1168 = vpop.f32.mrf.mxu0
      %v1169 = vpop.f32.mrf.mxu0
      %v1170 = vadd.f32 %v1001, %v1169
      %v1171 = vpop.f32.mrf.mxu0
      %1172 = vmatprep.mubr.bf16.mxu0 0
      %1173 = vmatmul.mubr.bf16.gmra.mxu0 %v879
      %v1174 = vpop.f32.mrf.mxu0
      %v1175 = vadd.f32 %v1006, %v1174
      %v1176 = vpop.f32.mrf.mxu0
      %v1177 = vpop.f32.mrf.mxu0
      %v1178 = vadd.f32 %v1009, %v1177
      %v1179 = vpop.f32.mrf.mxu0
      %1180 = vmatprep.mubr.bf16.mxu0 0
      %1181 = vmatmul.mubr.bf16.gmra.mxu0 %v881
      %v1182 = vpop.f32.mrf.mxu0
      %v1183 = vadd.f32 %v1014, %v1182
      %v1184 = vpop.f32.mrf.mxu0
      %v1185 = vpop.f32.mrf.mxu0
      %v1186 = vadd.f32 %v1017, %v1185
      %v1187 = vpop.f32.mrf.mxu0
      %1188 = vmatprep.mubr.bf16.mxu0 0
      %1189 = vmatmul.mubr.bf16.gmra.mxu0 %v883
      %v1190 = vpop.f32.mrf.mxu0
      %v1191 = vadd.f32 %v1022, %v1190
      %v1192 = vpop.f32.mrf.mxu0
      %v1193 = vpop.f32.mrf.mxu0
      %v1194 = vadd.f32 %v1025, %v1193
      %v1195 = vpop.f32.mrf.mxu0
      %1196 = vmatprep.mubr.bf16.mxu0 0
      %1197 = vmatmul.mubr.bf16.gmra.mxu0 %v885
      %v1198 = vpop.f32.mrf.mxu0
      %v1199 = vadd.f32 %v1030, %v1198
      %v1200 = vpop.f32.mrf.mxu0
      %v1201 = vpop.f32.mrf.mxu0
      %v1202 = vadd.f32 %v1033, %v1201
      %v1203 = vpop.f32.mrf.mxu0
      %1204 = vmatprep.mubr.bf16.mxu0 0
      %1205 = vmatmul.mubr.bf16.gmra.mxu0 %v887
      %v1206 = vpop.f32.mrf.mxu0
      %v1207 = vadd.f32 %v1038, %v1206
      %v1208 = vpop.f32.mrf.mxu0
      %v1209 = vpop.f32.mrf.mxu0
      %v1210 = vadd.f32 %v1041, %v1209
      %v1211 = vpop.f32.mrf.mxu0
      %1212 = vmatprep.mubr.bf16.mxu0 0
      %1213 = vmatmul.mubr.bf16.gmra.mxu0 %v889
      %v1214 = vpop.f32.mrf.mxu0
      %v1215 = vadd.f32 %v1046, %v1214
      %v1216 = vpop.f32.mrf.mxu0
      %v1217 = vpop.f32.mrf.mxu0
      %v1218 = vadd.f32 %v1049, %v1217
      %v1219 = vpop.f32.mrf.mxu0
      %1220 = vmatprep.mubr.bf16.mxu0 0
      %1221 = vmatmul.mubr.bf16.gmra.mxu0 %v891
      %v1222 = vpop.f32.mrf.mxu0
      %v1223 = vadd.f32 %v1054, %v1222
      %v1224 = vpop.f32.mrf.mxu0
      %v1225 = vpop.f32.mrf.mxu0
      %v1226 = vadd.f32 %v1057, %v1225
      %v1227 = vpop.f32.mrf.mxu0
      %1228 = vdwg.mxu0
      %v1231 = vunpack.c.l.b16 %v224
      %v1232 = vunpack.c.l.b16 %v225
      %v1233 = vpack.c.b16 %v1232, %v1231
      %v1235 = vsel %vm895, %v1233, 0
      %1237 = vmatprep.subr.bf16.mxu0 0
      %1238 = vmatpush1.bf16.msra.mxu0 0
      %1239 = vmatprep.subr.bf16.mxu0 0
      %1240 = vmatpush1.bf16.msra.mxu0 0
      %1241 = vmatprep.subr.bf16.mxu0 0
      %1242 = vmatpush1.bf16.msra.mxu0 0
      %1243 = vmatprep.subr.bf16.mxu0 0
      %1244 = vmatpush1.bf16.msra.mxu0 0
      %1245 = vmatprep.subr.bf16.mxu0 0
      %1246 = vmatpush1.bf16.msra.mxu0 0
      %1247 = vmatprep.subr.bf16.mxu0 0
      %1248 = vmatpush1.bf16.msra.mxu0 0
      %1249 = vmatprep.subr.bf16.mxu0 0
      %1250 = vmatpush1.bf16.msra.mxu0 0
      %1251 = vmatprep.subr.bf16.mxu0 0
      %1252 = vmatpush1.bf16.msra.mxu0 %v1235
      %1253 = vmatprep.subr.bf16.mxu0 0
      %1254 = vmatpush2.bf16.msra.mxu0 0
      %1255 = vmatprep.subr.bf16.mxu0 0
      %1256 = vmatpush2.bf16.msra.mxu0 0
      %1257 = vmatprep.subr.bf16.mxu0 0
      %1258 = vmatpush2.bf16.msra.mxu0 0
      %1259 = vmatprep.subr.bf16.mxu0 0
      %1260 = vmatpush2.bf16.msra.mxu0 0
      %1261 = vmatprep.subr.bf16.mxu0 0
      %1262 = vmatpush2.bf16.msra.mxu0 0
      %1263 = vmatprep.subr.bf16.mxu0 0
      %1264 = vmatpush2.bf16.msra.mxu0 0
      %1265 = vmatprep.subr.bf16.mxu0 0
      %1266 = vmatpush2.bf16.msra.mxu0 0
      %1267 = vmatprep.subr.bf16.mxu0 0
      %1268 = vmatpush2.bf16.msra.mxu0 0
      %1269 = vmatprep.mubr.bf16.mxu0 0
      %1270 = vmatmul.mubr.bf16.gmra.mxu0 %v865
      %v1271 = vpop.f32.mrf.mxu0
      %v1272 = vadd.f32 0.0, %v1271
      %v1273 = vpop.f32.mrf.mxu0
      %v1274 = vpop.f32.mrf.mxu0
      %v1275 = vadd.f32 0.0, %v1274
      %v1276 = vpop.f32.mrf.mxu0
      %1277 = vmatprep.mubr.bf16.mxu0 0
      %1278 = vmatmul.mubr.bf16.gmra.mxu0 %v867
      %v1279 = vpop.f32.mrf.mxu0
      %v1280 = vadd.f32 0.0, %v1279
      %v1281 = vpop.f32.mrf.mxu0
      %v1282 = vpop.f32.mrf.mxu0
      %v1283 = vadd.f32 0.0, %v1282
      %v1284 = vpop.f32.mrf.mxu0
      %1285 = vmatprep.mubr.bf16.mxu0 0
      %1286 = vmatmul.mubr.bf16.gmra.mxu0 %v869
      %v1287 = vpop.f32.mrf.mxu0
      %v1288 = vadd.f32 0.0, %v1287
      %v1289 = vpop.f32.mrf.mxu0
      %v1290 = vpop.f32.mrf.mxu0
      %v1291 = vadd.f32 0.0, %v1290
      %v1292 = vpop.f32.mrf.mxu0
      %1293 = vmatprep.mubr.bf16.mxu0 0
      %1294 = vmatmul.mubr.bf16.gmra.mxu0 %v871
      %v1295 = vpop.f32.mrf.mxu0
      %v1296 = vadd.f32 0.0, %v1295
      %v1297 = vpop.f32.mrf.mxu0
      %v1298 = vpop.f32.mrf.mxu0
      %v1299 = vadd.f32 0.0, %v1298
      %v1300 = vpop.f32.mrf.mxu0
      %1301 = vmatprep.mubr.bf16.mxu0 0
      %1302 = vmatmul.mubr.bf16.gmra.mxu0 %v873
      %v1303 = vpop.f32.mrf.mxu0
      %v1304 = vadd.f32 0.0, %v1303
      %v1305 = vpop.f32.mrf.mxu0
      %v1306 = vpop.f32.mrf.mxu0
      %v1307 = vadd.f32 0.0, %v1306
      %v1308 = vpop.f32.mrf.mxu0
      %1309 = vmatprep.mubr.bf16.mxu0 0
      %1310 = vmatmul.mubr.bf16.gmra.mxu0 %v875
      %v1311 = vpop.f32.mrf.mxu0
      %v1312 = vadd.f32 0.0, %v1311
      %v1313 = vpop.f32.mrf.mxu0
      %v1314 = vpop.f32.mrf.mxu0
      %v1315 = vadd.f32 0.0, %v1314
      %v1316 = vpop.f32.mrf.mxu0
      %1317 = vmatprep.mubr.bf16.mxu0 0
      %1318 = vmatmul.mubr.bf16.gmra.mxu0 %v877
      %v1319 = vpop.f32.mrf.mxu0
      %v1320 = vadd.f32 0.0, %v1319
      %v1321 = vpop.f32.mrf.mxu0
      %v1322 = vpop.f32.mrf.mxu0
      %v1323 = vadd.f32 0.0, %v1322
      %v1324 = vpop.f32.mrf.mxu0
      %1325 = vmatprep.mubr.bf16.mxu0 0
      %1326 = vmatmul.mubr.bf16.gmra.mxu0 %v879
      %v1327 = vpop.f32.mrf.mxu0
      %v1328 = vadd.f32 0.0, %v1327
      %v1329 = vpop.f32.mrf.mxu0
      %v1330 = vpop.f32.mrf.mxu0
      %v1331 = vadd.f32 0.0, %v1330
      %v1332 = vpop.f32.mrf.mxu0
      %1333 = vmatprep.mubr.bf16.mxu0 0
      %1334 = vmatmul.mubr.bf16.gmra.mxu0 %v881
      %v1335 = vpop.f32.mrf.mxu0
      %v1336 = vadd.f32 0.0, %v1335
      %v1337 = vpop.f32.mrf.mxu0
      %v1338 = vpop.f32.mrf.mxu0
      %v1339 = vadd.f32 0.0, %v1338
      %v1340 = vpop.f32.mrf.mxu0
      %1341 = vmatprep.mubr.bf16.mxu0 0
      %1342 = vmatmul.mubr.bf16.gmra.mxu0 %v883
      %v1343 = vpop.f32.mrf.mxu0
      %v1344 = vadd.f32 0.0, %v1343
      %v1345 = vpop.f32.mrf.mxu0
      %v1346 = vpop.f32.mrf.mxu0
      %v1347 = vadd.f32 0.0, %v1346
      %v1348 = vpop.f32.mrf.mxu0
      %1349 = vmatprep.mubr.bf16.mxu0 0
      %1350 = vmatmul.mubr.bf16.gmra.mxu0 %v885
      %v1351 = vpop.f32.mrf.mxu0
      %v1352 = vadd.f32 0.0, %v1351
      %v1353 = vpop.f32.mrf.mxu0
      %v1354 = vpop.f32.mrf.mxu0
      %v1355 = vadd.f32 0.0, %v1354
      %v1356 = vpop.f32.mrf.mxu0
      %1357 = vmatprep.mubr.bf16.mxu0 0
      %1358 = vmatmul.mubr.bf16.gmra.mxu0 %v887
      %v1359 = vpop.f32.mrf.mxu0
      %v1360 = vadd.f32 0.0, %v1359
      %v1361 = vpop.f32.mrf.mxu0
      %v1362 = vpop.f32.mrf.mxu0
      %v1363 = vadd.f32 0.0, %v1362
      %v1364 = vpop.f32.mrf.mxu0
      %1365 = vmatprep.mubr.bf16.mxu0 0
      %1366 = vmatmul.mubr.bf16.gmra.mxu0 %v889
      %v1367 = vpop.f32.mrf.mxu0
      %v1368 = vadd.f32 0.0, %v1367
      %v1369 = vpop.f32.mrf.mxu0
      %v1370 = vpop.f32.mrf.mxu0
      %v1371 = vadd.f32 0.0, %v1370
      %v1372 = vpop.f32.mrf.mxu0
      %1373 = vmatprep.mubr.bf16.mxu0 0
      %1374 = vmatmul.mubr.bf16.gmra.mxu0 %v891
      %v1375 = vpop.f32.mrf.mxu0
      %v1376 = vadd.f32 0.0, %v1375
      %v1377 = vpop.f32.mrf.mxu0
      %v1378 = vpop.f32.mrf.mxu0
      %v1379 = vadd.f32 0.0, %v1378
      %v1380 = vpop.f32.mrf.mxu0
      %1381 = vmatprep.mubr.bf16.mxu0 0
      %1382 = vmatmul.mubr.bf16.gmra.mxu0 %v893
      %v1383 = vpop.f32.mrf.mxu0
      %v1384 = vadd.f32 0.0, %v1383
      %v1385 = vpop.f32.mrf.mxu0
      %v1386 = vpop.f32.mrf.mxu0
      %v1387 = vadd.f32 0.0, %v1386
      %v1388 = vpop.f32.mrf.mxu0
      %1389 = vmatprep.mubr.bf16.mxu0 0
      %1390 = vmatmul.mubr.bf16.gmra.mxu0 %v891
      %v1391 = vpop.f32.mrf.mxu0
      %v1392 = vadd.f32 0.0, %v1391
      %v1393 = vpop.f32.mrf.mxu0
      %v1394 = vpop.f32.mrf.mxu0
      %v1395 = vadd.f32 0.0, %v1394
      %v1396 = vpop.f32.mrf.mxu0
      %1397 = vdwg.mxu0
      %v1398 = vadd.f32 %v1103, %v1272
      %v1399 = vadd.f32 %v1106, %v1275
      %v1400 = vadd.f32 %v1111, %v1280
      %v1401 = vadd.f32 %v1114, %v1283
      %v1402 = vadd.f32 %v1119, %v1288
      %v1403 = vadd.f32 %v1122, %v1291
      %v1404 = vadd.f32 %v1127, %v1296
      %v1405 = vadd.f32 %v1130, %v1299
      %v1406 = vadd.f32 %v1135, %v1304
      %v1407 = vadd.f32 %v1138, %v1307
      %v1408 = vadd.f32 %v1143, %v1312
      %v1409 = vadd.f32 %v1146, %v1315
      %v1410 = vadd.f32 %v1151, %v1320
      %v1411 = vadd.f32 %v1154, %v1323
      %v1412 = vadd.f32 %v1159, %v1328
      %v1413 = vadd.f32 %v1162, %v1331
      %v1414 = vadd.f32 %v1167, %v1336
      %v1415 = vadd.f32 %v1170, %v1339
      %v1416 = vadd.f32 %v1175, %v1344
      %v1417 = vadd.f32 %v1178, %v1347
      %v1418 = vadd.f32 %v1183, %v1352
      %v1419 = vadd.f32 %v1186, %v1355
      %v1420 = vadd.f32 %v1191, %v1360
      %v1421 = vadd.f32 %v1194, %v1363
      %v1422 = vadd.f32 %v1199, %v1368
      %v1423 = vadd.f32 %v1202, %v1371
      %v1424 = vadd.f32 %v1207, %v1376
      %v1425 = vadd.f32 %v1210, %v1379
      %v1426 = vadd.f32 %v1215, %v1384
      %v1427 = vadd.f32 %v1218, %v1387
      %v1428 = vadd.f32 %v1223, %v1392
      %v1429 = vadd.f32 %v1226, %v1395
      %v1430 = vsel %vm770, %v1398, 0.0
      %v1431 = vsel %vm770, %v1399, 0.0
      %v1432 = vadd.f32 %v1430, %v1431
      %v1433 = vsel %vm770, %v1400, 0.0
      %v1434 = vadd.f32 %v1432, %v1433
      %v1435 = vsel %vm770, %v1401, 0.0
      %v1436 = vadd.f32 %v1434, %v1435
      %v1437 = vsel %vm770, %v1402, 0.0
      %v1438 = vadd.f32 %v1436, %v1437
      %v1439 = vsel %vm770, %v1403, 0.0
      %v1440 = vadd.f32 %v1438, %v1439
      %v1441 = vsel %vm770, %v1404, 0.0
      %v1442 = vadd.f32 %v1440, %v1441
      %v1443 = vsel %vm770, %v1405, 0.0
      %v1444 = vadd.f32 %v1442, %v1443
      %v1445 = vsel %vm770, %v1406, 0.0
      %v1446 = vadd.f32 %v1444, %v1445
      %v1447 = vsel %vm770, %v1407, 0.0
      %v1448 = vadd.f32 %v1446, %v1447
      %v1449 = vsel %vm770, %v1408, 0.0
      %v1450 = vadd.f32 %v1448, %v1449
      %v1451 = vsel %vm770, %v1409, 0.0
      %v1452 = vadd.f32 %v1450, %v1451
      %v1453 = vsel %vm770, %v1410, 0.0
      %v1454 = vadd.f32 %v1452, %v1453
      %v1455 = vsel %vm770, %v1411, 0.0
      %v1456 = vadd.f32 %v1454, %v1455
      %v1457 = vsel %vm770, %v1412, 0.0
      %v1458 = vadd.f32 %v1456, %v1457
      %v1459 = vsel %vm770, %v1413, 0.0
      %v1460 = vadd.f32 %v1458, %v1459
      %v1461 = vsel %vm770, %v1414, 0.0
      %v1462 = vadd.f32 %v1460, %v1461
      %v1463 = vsel %vm770, %v1415, 0.0
      %v1464 = vadd.f32 %v1462, %v1463
      %v1465 = vsel %vm770, %v1416, 0.0
      %v1466 = vadd.f32 %v1464, %v1465
      %v1467 = vsel %vm770, %v1417, 0.0
      %v1468 = vadd.f32 %v1466, %v1467
      %v1469 = vsel %vm770, %v1418, 0.0
      %v1470 = vadd.f32 %v1468, %v1469
      %v1471 = vsel %vm770, %v1419, 0.0
      %v1472 = vadd.f32 %v1470, %v1471
      %v1473 = vsel %vm770, %v1420, 0.0
      %v1474 = vadd.f32 %v1472, %v1473
      %v1475 = vsel %vm770, %v1421, 0.0
      %v1476 = vadd.f32 %v1474, %v1475
      %v1477 = vsel %vm770, %v1422, 0.0
      %v1478 = vadd.f32 %v1476, %v1477
      %v1479 = vsel %vm770, %v1423, 0.0
      %v1480 = vadd.f32 %v1478, %v1479
      %v1481 = vsel %vm770, %v1424, 0.0
      %v1482 = vadd.f32 %v1480, %v1481
      %v1483 = vsel %vm770, %v1425, 0.0
      %v1484 = vadd.f32 %v1482, %v1483
      %v1485 = vsel %vm770, %v1426, 0.0
      %v1486 = vadd.f32 %v1484, %v1485
      %v1487 = vsel %vm770, %v1427, 0.0
      %v1488 = vadd.f32 %v1486, %v1487
      %v1489 = vsel %vm770, %v1428, 0.0
      %v1490 = vadd.f32 %v1488, %v1489
      %v1491 = vsel %vm770, %v1429, 0.0
      %v1492 = vadd.f32 %v1490, %v1491
      %v1493 = vrot.slane %v1492, 4
      %v1494 = vadd.f32 %v1492, %v1493
      %v1495 = vrot.slane %v1494, 2
      %v1496 = vadd.f32 %v1494, %v1495
      %v1497 = vrot.slane %v1496, 1
      %v1498 = vadd.f32 %v1496, %v1497
      %v1499 = vmul.f32 %v1398, %v1398
      %v1500 = vmul.f32 %v1399, %v1399
      %v1501 = vmul.f32 %v1400, %v1400
      %v1502 = vmul.f32 %v1401, %v1401
      %v1503 = vmul.f32 %v1402, %v1402
      %v1504 = vmul.f32 %v1403, %v1403
      %v1505 = vmul.f32 %v1404, %v1404
      %v1506 = vmul.f32 %v1405, %v1405
      %v1507 = vmul.f32 %v1406, %v1406
      %v1508 = vmul.f32 %v1407, %v1407
      %v1509 = vmul.f32 %v1408, %v1408
      %v1510 = vmul.f32 %v1409, %v1409
      %v1511 = vmul.f32 %v1410, %v1410
      %v1512 = vmul.f32 %v1411, %v1411
      %v1513 = vmul.f32 %v1412, %v1412
      %v1514 = vmul.f32 %v1413, %v1413
      %v1515 = vmul.f32 %v1414, %v1414
      %v1516 = vmul.f32 %v1415, %v1415
      %v1517 = vmul.f32 %v1416, %v1416
      %v1518 = vmul.f32 %v1417, %v1417
      %v1519 = vmul.f32 %v1418, %v1418
      %v1520 = vmul.f32 %v1419, %v1419
      %v1521 = vmul.f32 %v1420, %v1420
      %v1522 = vmul.f32 %v1421, %v1421
      %v1523 = vmul.f32 %v1422, %v1422
      %v1524 = vmul.f32 %v1423, %v1423
      %v1525 = vmul.f32 %v1424, %v1424
      %v1526 = vmul.f32 %v1425, %v1425
      %v1527 = vmul.f32 %v1426, %v1426
      %v1528 = vmul.f32 %v1427, %v1427
      %v1529 = vmul.f32 %v1428, %v1428
      %v1530 = vmul.f32 %v1429, %v1429
      %v1531 = vsel %vm770, %v1499, 0.0
      %v1532 = vsel %vm770, %v1500, 0.0
      %v1533 = vadd.f32 %v1531, %v1532
      %v1534 = vsel %vm770, %v1501, 0.0
      %v1535 = vadd.f32 %v1533, %v1534
      %v1536 = vsel %vm770, %v1502, 0.0
      %v1537 = vadd.f32 %v1535, %v1536
      %v1538 = vsel %vm770, %v1503, 0.0
      %v1539 = vadd.f32 %v1537, %v1538
      %v1540 = vsel %vm770, %v1504, 0.0
      %v1541 = vadd.f32 %v1539, %v1540
      %v1542 = vsel %vm770, %v1505, 0.0
      %v1543 = vadd.f32 %v1541, %v1542
      %v1544 = vsel %vm770, %v1506, 0.0
      %v1545 = vadd.f32 %v1543, %v1544
      %v1546 = vsel %vm770, %v1507, 0.0
      %v1547 = vadd.f32 %v1545, %v1546
      %v1548 = vsel %vm770, %v1508, 0.0
      %v1549 = vadd.f32 %v1547, %v1548
      %v1550 = vsel %vm770, %v1509, 0.0
      %v1551 = vadd.f32 %v1549, %v1550
      %v1552 = vsel %vm770, %v1510, 0.0
      %v1553 = vadd.f32 %v1551, %v1552
      %v1554 = vsel %vm770, %v1511, 0.0
      %v1555 = vadd.f32 %v1553, %v1554
      %v1556 = vsel %vm770, %v1512, 0.0
      %v1557 = vadd.f32 %v1555, %v1556
      %v1558 = vsel %vm770, %v1513, 0.0
      %v1559 = vadd.f32 %v1557, %v1558
      %v1560 = vsel %vm770, %v1514, 0.0
      %v1561 = vadd.f32 %v1559, %v1560
      %v1562 = vsel %vm770, %v1515, 0.0
      %v1563 = vadd.f32 %v1561, %v1562
      %v1564 = vsel %vm770, %v1516, 0.0
      %v1565 = vadd.f32 %v1563, %v1564
      %v1566 = vsel %vm770, %v1517, 0.0
      %v1567 = vadd.f32 %v1565, %v1566
      %v1568 = vsel %vm770, %v1518, 0.0
      %v1569 = vadd.f32 %v1567, %v1568
      %v1570 = vsel %vm770, %v1519, 0.0
      %v1571 = vadd.f32 %v1569, %v1570
      %v1572 = vsel %vm770, %v1520, 0.0
      %v1573 = vadd.f32 %v1571, %v1572
      %v1574 = vsel %vm770, %v1521, 0.0
      %v1575 = vadd.f32 %v1573, %v1574
      %v1576 = vsel %vm770, %v1522, 0.0
      %v1577 = vadd.f32 %v1575, %v1576
      %v1578 = vsel %vm770, %v1523, 0.0
      %v1579 = vadd.f32 %v1577, %v1578
      %v1580 = vsel %vm770, %v1524, 0.0
      %v1581 = vadd.f32 %v1579, %v1580
      %v1582 = vsel %vm770, %v1525, 0.0
      %v1583 = vadd.f32 %v1581, %v1582
      %v1584 = vsel %vm770, %v1526, 0.0
      %v1585 = vadd.f32 %v1583, %v1584
      %v1586 = vsel %vm770, %v1527, 0.0
      %v1587 = vadd.f32 %v1585, %v1586
      %v1588 = vsel %vm770, %v1528, 0.0
      %v1589 = vadd.f32 %v1587, %v1588
      %v1590 = vsel %vm770, %v1529, 0.0
      %v1591 = vadd.f32 %v1589, %v1590
      %v1592 = vsel %vm770, %v1530, 0.0
      %v1593 = vadd.f32 %v1591, %v1592
      %v1594 = vrot.slane %v1593, 4
      %v1595 = vadd.f32 %v1593, %v1594
      %v1596 = vrot.slane %v1595, 2
      %v1597 = vadd.f32 %v1595, %v1596
      %v1598 = vrot.slane %v1597, 1
      %v1599 = vadd.f32 %v1597, %v1598
      %v1600 = vmul.f32 %v1498, 0.00390625
      %v1601 = vmul.f32 %v1599, 0.00390625
      %v1602 = vmul.f32 %v1600, %v1600
      %v1603 = vsub.f32 %v1601, %v1602
      %v1604 = vadd.f32 %v1603, 1e-05
      %v1605 = vrsqrt.pop %v1604
      %v1606 = vsub.f32 %v1398, %v1600
      %v1607 = vsub.f32 %v1399, %v1600
      %v1608 = vsub.f32 %v1400, %v1600
      %v1609 = vsub.f32 %v1401, %v1600
      %v1610 = vsub.f32 %v1402, %v1600
      %v1611 = vsub.f32 %v1403, %v1600
      %v1612 = vsub.f32 %v1404, %v1600
      %v1613 = vsub.f32 %v1405, %v1600
      %v1614 = vsub.f32 %v1406, %v1600
      %v1615 = vsub.f32 %v1407, %v1600
      %v1616 = vsub.f32 %v1408, %v1600
      %v1617 = vsub.f32 %v1409, %v1600
      %v1618 = vsub.f32 %v1410, %v1600
      %v1619 = vsub.f32 %v1411, %v1600
      %v1620 = vsub.f32 %v1412, %v1600
      %v1621 = vsub.f32 %v1413, %v1600
      %v1622 = vsub.f32 %v1414, %v1600
      %v1623 = vsub.f32 %v1415, %v1600
      %v1624 = vsub.f32 %v1416, %v1600
      %v1625 = vsub.f32 %v1417, %v1600
      %v1626 = vsub.f32 %v1418, %v1600
      %v1627 = vsub.f32 %v1419, %v1600
      %v1628 = vsub.f32 %v1420, %v1600
      %v1629 = vsub.f32 %v1421, %v1600
      %v1630 = vsub.f32 %v1422, %v1600
      %v1631 = vsub.f32 %v1423, %v1600
      %v1632 = vsub.f32 %v1424, %v1600
      %v1633 = vsub.f32 %v1425, %v1600
      %v1634 = vsub.f32 %v1426, %v1600
      %v1635 = vsub.f32 %v1427, %v1600
      %v1636 = vsub.f32 %v1428, %v1600
      %v1637 = vsub.f32 %v1429, %v1600
      %v1638 = vmul.f32 %v1606, %v1605
      %v1639 = vmul.f32 %v1607, %v1605
      %v1640 = vmul.f32 %v1608, %v1605
      %v1641 = vmul.f32 %v1609, %v1605
      %v1642 = vmul.f32 %v1610, %v1605
      %v1643 = vmul.f32 %v1611, %v1605
      %v1644 = vmul.f32 %v1612, %v1605
      %v1645 = vmul.f32 %v1613, %v1605
      %v1646 = vmul.f32 %v1614, %v1605
      %v1647 = vmul.f32 %v1615, %v1605
      %v1648 = vmul.f32 %v1616, %v1605
      %v1649 = vmul.f32 %v1617, %v1605
      %v1650 = vmul.f32 %v1618, %v1605
      %v1651 = vmul.f32 %v1619, %v1605
      %v1652 = vmul.f32 %v1620, %v1605
      %v1653 = vmul.f32 %v1621, %v1605
      %v1654 = vmul.f32 %v1622, %v1605
      %v1655 = vmul.f32 %v1623, %v1605
      %v1656 = vmul.f32 %v1624, %v1605
      %v1657 = vmul.f32 %v1625, %v1605
      %v1658 = vmul.f32 %v1626, %v1605
      %v1659 = vmul.f32 %v1627, %v1605
      %v1660 = vmul.f32 %v1628, %v1605
      %v1661 = vmul.f32 %v1629, %v1605
      %v1662 = vmul.f32 %v1630, %v1605
      %v1663 = vmul.f32 %v1631, %v1605
      %v1664 = vmul.f32 %v1632, %v1605
      %v1665 = vmul.f32 %v1633, %v1605
      %v1666 = vmul.f32 %v1634, %v1605
      %v1667 = vmul.f32 %v1635, %v1605
      %v1668 = vmul.f32 %v1636, %v1605
      %v1669 = vmul.f32 %v1637, %v1605
      %v1670 = vmax.f32 %v1638, 0.0
      %v1671 = vmax.f32 %v1639, 0.0
      %v1672 = vmax.f32 %v1640, 0.0
      %v1673 = vmax.f32 %v1641, 0.0
      %v1674 = vmax.f32 %v1642, 0.0
      %v1675 = vmax.f32 %v1643, 0.0
      %v1676 = vmax.f32 %v1644, 0.0
      %v1677 = vmax.f32 %v1645, 0.0
      %v1678 = vmax.f32 %v1646, 0.0
      %v1679 = vmax.f32 %v1647, 0.0
      %v1680 = vmax.f32 %v1648, 0.0
      %v1681 = vmax.f32 %v1649, 0.0
      %v1682 = vmax.f32 %v1650, 0.0
      %v1683 = vmax.f32 %v1651, 0.0
      %v1684 = vmax.f32 %v1652, 0.0
      %v1685 = vmax.f32 %v1653, 0.0
      %v1686 = vmax.f32 %v1654, 0.0
      %v1687 = vmax.f32 %v1655, 0.0
      %v1688 = vmax.f32 %v1656, 0.0
      %v1689 = vmax.f32 %v1657, 0.0
      %v1690 = vmax.f32 %v1658, 0.0
      %v1691 = vmax.f32 %v1659, 0.0
      %v1692 = vmax.f32 %v1660, 0.0
      %v1693 = vmax.f32 %v1661, 0.0
      %v1694 = vmax.f32 %v1662, 0.0
      %v1695 = vmax.f32 %v1663, 0.0
      %v1696 = vmax.f32 %v1664, 0.0
      %v1697 = vmax.f32 %v1665, 0.0
      %v1698 = vmax.f32 %v1666, 0.0
      %v1699 = vmax.f32 %v1667, 0.0
      %v1700 = vmax.f32 %v1668, 0.0
      %v1701 = vmax.f32 %v1669, 0.0
      %v1702 = vpack.c.bf16 %v1671, %v1670
      %v1703 = vpack.c.bf16 %v1673, %v1672
      %v1704 = vpack.c.bf16 %v1675, %v1674
      %v1705 = vpack.c.bf16 %v1677, %v1676
      %v1706 = vpack.c.bf16 %v1679, %v1678
      %v1707 = vpack.c.bf16 %v1681, %v1680
      %v1708 = vpack.c.bf16 %v1683, %v1682
      %v1709 = vpack.c.bf16 %v1685, %v1684
      %v1710 = vpack.c.bf16 %v1687, %v1686
      %v1711 = vpack.c.bf16 %v1689, %v1688
      %v1712 = vpack.c.bf16 %v1691, %v1690
      %v1713 = vpack.c.bf16 %v1693, %v1692
      %v1714 = vpack.c.bf16 %v1695, %v1694
      %v1715 = vpack.c.bf16 %v1697, %v1696
      %v1716 = vpack.c.bf16 %v1699, %v1698
      %v1717 = vpack.c.bf16 %v1701, %v1700
      %v1718 = vld [vmem:[%s2] sm:$0xf]
      %v1719 = vld [vmem:[%s2 + $0x4] sm:$0x3]
      %v1720 = vld [vmem:[%s2 + $0x8] sm:$0xf]
      %v1721 = vld [vmem:[%s2 + $0xc] sm:$0x3]
      %v1722 = vld [vmem:[%s2 + $0x10] sm:$0xf]
      %v1723 = vld [vmem:[%s2 + $0x14] sm:$0x3]
      %v1725 = vshrl.u32 %v1702, 16
      %v1728 = vshrl.u32 %v1703, 16
      %v1731 = vshrl.u32 %v1704, 16
      %v1734 = vshrl.u32 %v1705, 16
      %v1737 = vshrl.u32 %v1706, 16
      %v1740 = vshrl.u32 %v1707, 16
      %v1743 = vshrl.u32 %v1708, 16
      %v1746 = vshrl.u32 %v1709, 16
      %v1749 = vshrl.u32 %v1710, 16
      %v1752 = vshrl.u32 %v1711, 16
      %v1755 = vshrl.u32 %v1712, 16
      %v1758 = vshrl.u32 %v1713, 16
      %v1761 = vshrl.u32 %v1714, 16
      %v1764 = vshrl.u32 %v1715, 16
      %v1767 = vshrl.u32 %v1716, 16
      %v1770 = vshrl.u32 %v1717, 16
      %v1788 = vrot.slane %v1725, 7
      %v1789 = vshll.u32 %v1702, 16
      %v1791 = vor.u32 %v1788, %v1789
      %v1792 = vrot.slane %v1728, 7
      %v1793 = vshll.u32 %v1703, 16
      %v1795 = vor.u32 %v1792, %v1793
      %v1796 = vrot.slane %v1731, 7
      %v1797 = vshll.u32 %v1704, 16
      %v1799 = vor.u32 %v1796, %v1797
      %v1800 = vrot.slane %v1734, 7
      %v1801 = vshll.u32 %v1705, 16
      %v1803 = vor.u32 %v1800, %v1801
      %v1804 = vrot.slane %v1737, 7
      %v1805 = vshll.u32 %v1706, 16
      %v1807 = vor.u32 %v1804, %v1805
      %v1808 = vrot.slane %v1740, 7
      %v1809 = vshll.u32 %v1707, 16
      %v1811 = vor.u32 %v1808, %v1809
      %v1812 = vrot.slane %v1743, 7
      %v1813 = vshll.u32 %v1708, 16
      %v1815 = vor.u32 %v1812, %v1813
      %v1816 = vrot.slane %v1746, 7
      %v1817 = vshll.u32 %v1709, 16
      %v1819 = vor.u32 %v1816, %v1817
      %v1820 = vrot.slane %v1749, 7
      %v1821 = vshll.u32 %v1710, 16
      %v1823 = vor.u32 %v1820, %v1821
      %v1824 = vrot.slane %v1752, 7
      %v1825 = vshll.u32 %v1711, 16
      %v1827 = vor.u32 %v1824, %v1825
      %v1828 = vrot.slane %v1755, 7
      %v1829 = vshll.u32 %v1712, 16
      %v1831 = vor.u32 %v1828, %v1829
      %v1832 = vrot.slane %v1758, 7
      %v1833 = vshll.u32 %v1713, 16
      %v1835 = vor.u32 %v1832, %v1833
      %v1836 = vrot.slane %v1761, 7
      %v1837 = vshll.u32 %v1714, 16
      %v1839 = vor.u32 %v1836, %v1837
      %v1840 = vrot.slane %v1764, 7
      %v1841 = vshll.u32 %v1715, 16
      %v1843 = vor.u32 %v1840, %v1841
      %v1844 = vrot.slane %v1767, 7
      %v1845 = vshll.u32 %v1716, 16
      %v1847 = vor.u32 %v1844, %v1845
      %v1848 = vrot.slane %v1770, 7
      %v1849 = vshll.u32 %v1717, 16
      %v1851 = vor.u32 %v1848, %v1849
      %v1884 = vrot.slane %v1789, 7
      %v1885 = vrot.slane %v1793, 7
      %v1886 = vrot.slane %v1797, 7
      %v1887 = vrot.slane %v1801, 7
      %v1888 = vrot.slane %v1805, 7
      %v1889 = vrot.slane %v1809, 7
      %v1890 = vrot.slane %v1813, 7
      %v1891 = vrot.slane %v1817, 7
      %v1892 = vrot.slane %v1821, 7
      %v1893 = vrot.slane %v1825, 7
      %v1894 = vrot.slane %v1829, 7
      %v1895 = vrot.slane %v1833, 7
      %v1896 = vrot.slane %v1837, 7
      %v1897 = vrot.slane %v1841, 7
      %v1898 = vrot.slane %v1845, 7
      %v1899 = vrot.slane %v1849, 7
      %v1916 = vsel %vm420, %v1725, %v1791
      %v1917 = vsel %vm420, %v1728, %v1795
      %v1918 = vsel %vm420, %v1731, %v1799
      %v1919 = vsel %vm420, %v1734, %v1803
      %v1920 = vsel %vm420, %v1737, %v1807
      %v1921 = vsel %vm420, %v1740, %v1811
      %v1922 = vsel %vm420, %v1743, %v1815
      %v1923 = vsel %vm420, %v1746, %v1819
      %v1924 = vsel %vm420, %v1749, %v1823
      %v1925 = vsel %vm420, %v1752, %v1827
      %v1926 = vsel %vm420, %v1755, %v1831
      %v1927 = vsel %vm420, %v1758, %v1835
      %v1928 = vsel %vm420, %v1761, %v1839
      %v1929 = vsel %vm420, %v1764, %v1843
      %v1930 = vsel %vm420, %v1767, %v1847
      %v1931 = vsel %vm420, %v1770, %v1851
      %v1932 = vsel %vm420, %v1788, %v1884
      %v1933 = vsel %vm420, %v1792, %v1885
      %v1934 = vsel %vm420, %v1796, %v1886
      %v1935 = vsel %vm420, %v1800, %v1887
      %v1936 = vsel %vm420, %v1804, %v1888
      %v1937 = vsel %vm420, %v1808, %v1889
      %v1938 = vsel %vm420, %v1812, %v1890
      %v1939 = vsel %vm420, %v1816, %v1891
      %v1940 = vsel %vm420, %v1820, %v1892
      %v1941 = vsel %vm420, %v1824, %v1893
      %v1942 = vsel %vm420, %v1828, %v1894
      %v1943 = vsel %vm420, %v1832, %v1895
      %v1944 = vsel %vm420, %v1836, %v1896
      %v1945 = vsel %vm420, %v1840, %v1897
      %v1946 = vsel %vm420, %v1844, %v1898
      %v1947 = vsel %vm420, %v1848, %v1899
      %v1949 = vshrl.u32 %v1917, 16
      %v1951 = vshll.u32 %v1917, 16
      %v1953 = vrot.slane %v1951, 1
      %v1954 = vor.u32 %v1949, %v1953
      %v1956 = vshll.u32 %v1933, 16
      %v1958 = vrot.slane %v1956, 1
      %v1959 = vsel %vm453, %v1954, %v1958
      %v1961 = vshrl.u32 %v1916, 16
      %v1963 = vshll.u32 %v1916, 16
      %v1965 = vrot.slane %v1963, 1
      %v1966 = vor.u32 %v1961, %v1965
      %v1968 = vshll.u32 %v1932, 16
      %v1970 = vrot.slane %v1968, 1
      %v1971 = vsel %vm453, %v1966, %v1970
      %v1973 = vshrl.u32 %v1918, 16
      %v1975 = vshll.u32 %v1918, 16
      %v1977 = vrot.slane %v1975, 1
      %v1978 = vor.u32 %v1973, %v1977
      %v1980 = vshll.u32 %v1934, 16
      %v1982 = vrot.slane %v1980, 1
      %v1983 = vsel %vm453, %v1978, %v1982
      %v1985 = vshrl.u32 %v1919, 16
      %v1987 = vshll.u32 %v1919, 16
      %v1989 = vrot.slane %v1987, 1
      %v1990 = vor.u32 %v1985, %v1989
      %v1992 = vshll.u32 %v1935, 16
      %v1994 = vrot.slane %v1992, 1
      %v1995 = vsel %vm453, %v1990, %v1994
      %v1997 = vshrl.u32 %v1920, 16
      %v1999 = vshll.u32 %v1920, 16
      %v2001 = vrot.slane %v1999, 1
      %v2002 = vor.u32 %v1997, %v2001
      %v2004 = vshll.u32 %v1936, 16
      %v2006 = vrot.slane %v2004, 1
      %v2007 = vsel %vm453, %v2002, %v2006
      %v2009 = vshrl.u32 %v1921, 16
      %v2011 = vshll.u32 %v1921, 16
      %v2013 = vrot.slane %v2011, 1
      %v2014 = vor.u32 %v2009, %v2013
      %v2016 = vshll.u32 %v1937, 16
      %v2018 = vrot.slane %v2016, 1
      %v2019 = vsel %vm453, %v2014, %v2018
      %v2021 = vshrl.u32 %v1922, 16
      %v2023 = vshll.u32 %v1922, 16
      %v2025 = vrot.slane %v2023, 1
      %v2026 = vor.u32 %v2021, %v2025
      %v2028 = vshll.u32 %v1938, 16
      %v2030 = vrot.slane %v2028, 1
      %v2031 = vsel %vm453, %v2026, %v2030
      %v2033 = vshrl.u32 %v1923, 16
      %v2035 = vshll.u32 %v1923, 16
      %v2037 = vrot.slane %v2035, 1
      %v2038 = vor.u32 %v2033, %v2037
      %v2040 = vshll.u32 %v1939, 16
      %v2042 = vrot.slane %v2040, 1
      %v2043 = vsel %vm453, %v2038, %v2042
      %v2045 = vshrl.u32 %v1924, 16
      %v2047 = vshll.u32 %v1924, 16
      %v2049 = vrot.slane %v2047, 1
      %v2050 = vor.u32 %v2045, %v2049
      %v2052 = vshll.u32 %v1940, 16
      %v2054 = vrot.slane %v2052, 1
      %v2055 = vsel %vm453, %v2050, %v2054
      %v2057 = vshrl.u32 %v1925, 16
      %v2059 = vshll.u32 %v1925, 16
      %v2061 = vrot.slane %v2059, 1
      %v2062 = vor.u32 %v2057, %v2061
      %v2064 = vshll.u32 %v1941, 16
      %v2066 = vrot.slane %v2064, 1
      %v2067 = vsel %vm453, %v2062, %v2066
      %v2069 = vshrl.u32 %v1926, 16
      %v2071 = vshll.u32 %v1926, 16
      %v2073 = vrot.slane %v2071, 1
      %v2074 = vor.u32 %v2069, %v2073
      %v2076 = vshll.u32 %v1942, 16
      %v2078 = vrot.slane %v2076, 1
      %v2079 = vsel %vm453, %v2074, %v2078
      %v2081 = vshrl.u32 %v1927, 16
      %v2083 = vshll.u32 %v1927, 16
      %v2085 = vrot.slane %v2083, 1
      %v2086 = vor.u32 %v2081, %v2085
      %v2088 = vshll.u32 %v1943, 16
      %v2090 = vrot.slane %v2088, 1
      %v2091 = vsel %vm453, %v2086, %v2090
      %v2093 = vshrl.u32 %v1928, 16
      %v2095 = vshll.u32 %v1928, 16
      %v2097 = vrot.slane %v2095, 1
      %v2098 = vor.u32 %v2093, %v2097
      %v2100 = vshll.u32 %v1944, 16
      %v2102 = vrot.slane %v2100, 1
      %v2103 = vsel %vm453, %v2098, %v2102
      %v2105 = vshrl.u32 %v1929, 16
      %v2107 = vshll.u32 %v1929, 16
      %v2109 = vrot.slane %v2107, 1
      %v2110 = vor.u32 %v2105, %v2109
      %v2112 = vshll.u32 %v1945, 16
      %v2114 = vrot.slane %v2112, 1
      %v2115 = vsel %vm453, %v2110, %v2114
      %v2117 = vshrl.u32 %v1930, 16
      %v2119 = vshll.u32 %v1930, 16
      %v2121 = vrot.slane %v2119, 1
      %v2122 = vor.u32 %v2117, %v2121
      %v2124 = vshll.u32 %v1946, 16
      %v2126 = vrot.slane %v2124, 1
      %v2127 = vsel %vm453, %v2122, %v2126
      %2128 = vrot.lane.b32.xlu0 %v1959, 4
      %v2129 = vpop.permute.xlu0 %2128
      %2130 = vrot.lane.b32.xlu0 %v1971, 4
      %v2131 = vpop.permute.xlu0 %2130
      %2132 = vrot.lane.b32.xlu0 %v1983, 4
      %v2133 = vpop.permute.xlu0 %2132
      %2134 = vrot.lane.b32.xlu0 %v1995, 4
      %v2135 = vpop.permute.xlu0 %2134
      %2136 = vrot.lane.b32.xlu0 %v2007, 4
      %v2137 = vpop.permute.xlu0 %2136
      %2138 = vrot.lane.b32.xlu0 %v2019, 4
      %v2139 = vpop.permute.xlu0 %2138
      %2140 = vrot.lane.b32.xlu0 %v2031, 4
      %v2141 = vpop.permute.xlu0 %2140
      %2142 = vrot.lane.b32.xlu0 %v2043, 4
      %v2143 = vpop.permute.xlu0 %2142
      %2144 = vrot.lane.b32.xlu0 %v2055, 4
      %v2145 = vpop.permute.xlu0 %2144
      %2146 = vrot.lane.b32.xlu0 %v2067, 4
      %v2147 = vpop.permute.xlu0 %2146
      %2148 = vrot.lane.b32.xlu0 %v2079, 4
      %v2149 = vpop.permute.xlu0 %2148
      %2150 = vrot.lane.b32.xlu0 %v2091, 4
      %v2151 = vpop.permute.xlu0 %2150
      %2152 = vrot.lane.b32.xlu0 %v2103, 4
      %v2153 = vpop.permute.xlu0 %2152
      %2154 = vrot.lane.b32.xlu0 %v2115, 4
      %v2155 = vpop.permute.xlu0 %2154
      %2156 = vrot.lane.b32.xlu0 %v2127, 4
      %v2157 = vpop.permute.xlu0 %2156
      %v2188 = vrot.slane %v1917, 1
      %v2189 = vrot.slane %v1933, 1
      %v2190 = vsel %vm694, %v2188, %v2189
      %v2191 = vrot.slane %v1916, 1
      %v2192 = vrot.slane %v1932, 1
      %v2193 = vsel %vm694, %v2191, %v2192
      %v2194 = vrot.slane %v1918, 1
      %v2195 = vrot.slane %v1934, 1
      %v2196 = vsel %vm694, %v2194, %v2195
      %v2197 = vrot.slane %v1919, 1
      %v2198 = vrot.slane %v1935, 1
      %v2199 = vsel %vm694, %v2197, %v2198
      %v2200 = vrot.slane %v1920, 1
      %v2201 = vrot.slane %v1936, 1
      %v2202 = vsel %vm694, %v2200, %v2201
      %v2203 = vrot.slane %v1921, 1
      %v2204 = vrot.slane %v1937, 1
      %v2205 = vsel %vm694, %v2203, %v2204
      %v2206 = vrot.slane %v1922, 1
      %v2207 = vrot.slane %v1938, 1
      %v2208 = vsel %vm694, %v2206, %v2207
      %v2209 = vrot.slane %v1923, 1
      %v2210 = vrot.slane %v1939, 1
      %v2211 = vsel %vm694, %v2209, %v2210
      %v2212 = vrot.slane %v1924, 1
      %v2213 = vrot.slane %v1940, 1
      %v2214 = vsel %vm694, %v2212, %v2213
      %v2215 = vrot.slane %v1925, 1
      %v2216 = vrot.slane %v1941, 1
      %v2217 = vsel %vm694, %v2215, %v2216
      %v2218 = vrot.slane %v1926, 1
      %v2219 = vrot.slane %v1942, 1
      %v2220 = vsel %vm694, %v2218, %v2219
      %v2221 = vrot.slane %v1927, 1
      %v2222 = vrot.slane %v1943, 1
      %v2223 = vsel %vm694, %v2221, %v2222
      %v2224 = vrot.slane %v1928, 1
      %v2225 = vrot.slane %v1944, 1
      %v2226 = vsel %vm694, %v2224, %v2225
      %v2227 = vrot.slane %v1929, 1
      %v2228 = vrot.slane %v1945, 1
      %v2229 = vsel %vm694, %v2227, %v2228
      %v2230 = vrot.slane %v1930, 1
      %v2231 = vrot.slane %v1946, 1
      %v2232 = vsel %vm694, %v2230, %v2231
      %2233 = vrot.lane.b32.xlu0 %v2190, 8
      %v2234 = vpop.permute.xlu0 %2233
      %2235 = vrot.lane.b32.xlu0 %v2193, 8
      %v2236 = vpop.permute.xlu0 %2235
      %2237 = vrot.lane.b32.xlu0 %v2196, 8
      %v2238 = vpop.permute.xlu0 %2237
      %2239 = vrot.lane.b32.xlu0 %v2199, 8
      %v2240 = vpop.permute.xlu0 %2239
      %2241 = vrot.lane.b32.xlu0 %v2202, 8
      %v2242 = vpop.permute.xlu0 %2241
      %2243 = vrot.lane.b32.xlu0 %v2205, 8
      %v2244 = vpop.permute.xlu0 %2243
      %2245 = vrot.lane.b32.xlu0 %v2208, 8
      %v2246 = vpop.permute.xlu0 %2245
      %2247 = vrot.lane.b32.xlu0 %v2211, 8
      %v2248 = vpop.permute.xlu0 %2247
      %2249 = vrot.lane.b32.xlu0 %v2214, 8
      %v2250 = vpop.permute.xlu0 %2249
      %2251 = vrot.lane.b32.xlu0 %v2217, 8
      %v2252 = vpop.permute.xlu0 %2251
      %2253 = vrot.lane.b32.xlu0 %v2220, 8
      %v2254 = vpop.permute.xlu0 %2253
      %2255 = vrot.lane.b32.xlu0 %v2223, 8
      %v2256 = vpop.permute.xlu0 %2255
      %2257 = vrot.lane.b32.xlu0 %v2226, 8
      %v2258 = vpop.permute.xlu0 %2257
      %2259 = vrot.lane.b32.xlu0 %v2229, 8
      %v2260 = vpop.permute.xlu0 %2259
      %2261 = vrot.lane.b32.xlu0 %v2232, 8
      %v2262 = vpop.permute.xlu0 %2261
      %v2264 = vsel %vm770, %v1917, %v2129
      %v2266 = vsel %vm770, %v1916, %v2131
      %v2268 = vsel %vm770, %v1918, %v2133
      %v2270 = vsel %vm770, %v1919, %v2135
      %v2272 = vsel %vm770, %v1920, %v2137
      %v2274 = vsel %vm770, %v1921, %v2139
      %v2276 = vsel %vm770, %v1922, %v2141
      %v2278 = vsel %vm770, %v1923, %v2143
      %v2280 = vsel %vm770, %v1924, %v2145
      %v2282 = vsel %vm770, %v1925, %v2147
      %v2284 = vsel %vm770, %v1926, %v2149
      %v2286 = vsel %vm770, %v1927, %v2151
      %v2288 = vsel %vm770, %v1928, %v2153
      %v2290 = vsel %vm770, %v1929, %v2155
      %v2292 = vsel %vm770, %v1930, %v2157
      %v2294 = vsel %vm801, %v2264, %v2234
      %v2296 = vsel %vm801, %v2266, %v2236
      %v2298 = vsel %vm801, %v2268, %v2238
      %v2300 = vsel %vm801, %v2270, %v2240
      %v2302 = vsel %vm801, %v2272, %v2242
      %v2304 = vsel %vm801, %v2274, %v2244
      %v2306 = vsel %vm801, %v2276, %v2246
      %v2308 = vsel %vm801, %v2278, %v2248
      %v2310 = vsel %vm801, %v2280, %v2250
      %v2312 = vsel %vm801, %v2282, %v2252
      %v2314 = vsel %vm801, %v2284, %v2254
      %v2316 = vsel %vm801, %v2286, %v2256
      %v2318 = vsel %vm801, %v2288, %v2258
      %v2320 = vsel %vm801, %v2290, %v2260
      %v2322 = vsel %vm801, %v2292, %v2262
      %v2324 = vshrl.u32 %v1931, 16
      %v2326 = vshll.u32 %v1931, 16
      %v2328 = vrot.slane %v2326, 1
      %v2329 = vor.u32 %v2324, %v2328
      %v2331 = vshll.u32 %v1947, 16
      %v2333 = vrot.slane %v2331, 1
      %v2334 = vsel %vm453, %v2329, %v2333
      %2335 = vrot.lane.b32.xlu0 %v2334, 4
      %v2336 = vpop.permute.xlu0 %2335
      %v2339 = vrot.slane %v1931, 1
      %v2340 = vrot.slane %v1947, 1
      %v2341 = vsel %vm694, %v2339, %v2340
      %2342 = vrot.lane.b32.xlu0 %v2341, 8
      %v2343 = vpop.permute.xlu0 %2342
      %v2345 = vsel %vm770, %v1931, %v2336
      %v2347 = vsel %vm801, %v2345, %v2343
      %v2350 = vunpack.c.l.b16 %v1720
      %v2351 = vunpack.c.l.b16 %v1721
      %v2352 = vpack.c.b16 %v2351, %v2350
      %v2353 = vsel %vm862, %v2296, 0
      %v2355 = vsel %vm862, %v2294, 0
      %v2357 = vsel %vm862, %v2298, 0
      %v2359 = vsel %vm862, %v2300, 0
      %v2361 = vsel %vm862, %v2302, 0
      %v2363 = vsel %vm862, %v2304, 0
      %v2365 = vsel %vm862, %v2306, 0
      %v2367 = vsel %vm862, %v2308, 0
      %v2369 = vsel %vm862, %v2310, 0
      %v2371 = vsel %vm862, %v2312, 0
      %v2373 = vsel %vm862, %v2314, 0
      %v2375 = vsel %vm862, %v2316, 0
      %v2377 = vsel %vm862, %v2318, 0
      %v2379 = vsel %vm862, %v2320, 0
      %v2381 = vsel %vm862, %v2322, 0
      %v2383 = vsel %vm862, %v2347, 0
      %v2386 = vsel %vm895, %v2352, 0
      %2388 = vmatprep.subr.bf16.mxu0 0
      %2389 = vmatpush1.bf16.msra.mxu0 0
      %2390 = vmatprep.subr.bf16.mxu0 0
      %2391 = vmatpush1.bf16.msra.mxu0 0
      %2392 = vmatprep.subr.bf16.mxu0 0
      %2393 = vmatpush1.bf16.msra.mxu0 0
      %2394 = vmatprep.subr.bf16.mxu0 0
      %2395 = vmatpush1.bf16.msra.mxu0 0
      %2396 = vmatprep.subr.bf16.mxu0 0
      %2397 = vmatpush1.bf16.msra.mxu0 0
      %2398 = vmatprep.subr.bf16.mxu0 0
      %2399 = vmatpush1.bf16.msra.mxu0 0
      %2400 = vmatprep.subr.bf16.mxu0 0
      %2401 = vmatpush1.bf16.msra.mxu0 0
      %2402 = vmatprep.subr.bf16.mxu0 0
      %2403 = vmatpush1.bf16.msra.mxu0 %v2386
      %2404 = vmatprep.subr.bf16.mxu0 0
      %2405 = vmatpush2.bf16.msra.mxu0 0
      %2406 = vmatprep.subr.bf16.mxu0 0
      %2407 = vmatpush2.bf16.msra.mxu0 0
      %2408 = vmatprep.subr.bf16.mxu0 0
      %2409 = vmatpush2.bf16.msra.mxu0 0
      %2410 = vmatprep.subr.bf16.mxu0 0
      %2411 = vmatpush2.bf16.msra.mxu0 0
      %2412 = vmatprep.subr.bf16.mxu0 0
      %2413 = vmatpush2.bf16.msra.mxu0 0
      %2414 = vmatprep.subr.bf16.mxu0 0
      %2415 = vmatpush2.bf16.msra.mxu0 0
      %2416 = vmatprep.subr.bf16.mxu0 0
      %2417 = vmatpush2.bf16.msra.mxu0 0
      %2418 = vmatprep.subr.bf16.mxu0 0
      %2419 = vmatpush2.bf16.msra.mxu0 0
      %2420 = vmatprep.mubr.bf16.mxu0 0
      %2421 = vmatmul.mubr.bf16.gmra.mxu0 %v2353
      %v2422 = vpop.f32.mrf.mxu0
      %v2423 = vadd.f32 0.0, %v2422
      %v2424 = vpop.f32.mrf.mxu0
      %v2425 = vpop.f32.mrf.mxu0
      %v2426 = vadd.f32 0.0, %v2425
      %v2427 = vpop.f32.mrf.mxu0
      %2428 = vmatprep.mubr.bf16.mxu0 0
      %2429 = vmatmul.mubr.bf16.gmra.mxu0 %v2355
      %v2430 = vpop.f32.mrf.mxu0
      %v2431 = vadd.f32 0.0, %v2430
      %v2432 = vpop.f32.mrf.mxu0
      %v2433 = vpop.f32.mrf.mxu0
      %v2434 = vadd.f32 0.0, %v2433
      %v2435 = vpop.f32.mrf.mxu0
      %2436 = vmatprep.mubr.bf16.mxu0 0
      %2437 = vmatmul.mubr.bf16.gmra.mxu0 %v2357
      %v2438 = vpop.f32.mrf.mxu0
      %v2439 = vadd.f32 0.0, %v2438
      %v2440 = vpop.f32.mrf.mxu0
      %v2441 = vpop.f32.mrf.mxu0
      %v2442 = vadd.f32 0.0, %v2441
      %v2443 = vpop.f32.mrf.mxu0
      %2444 = vmatprep.mubr.bf16.mxu0 0
      %2445 = vmatmul.mubr.bf16.gmra.mxu0 %v2359
      %v2446 = vpop.f32.mrf.mxu0
      %v2447 = vadd.f32 0.0, %v2446
      %v2448 = vpop.f32.mrf.mxu0
      %v2449 = vpop.f32.mrf.mxu0
      %v2450 = vadd.f32 0.0, %v2449
      %v2451 = vpop.f32.mrf.mxu0
      %2452 = vmatprep.mubr.bf16.mxu0 0
      %2453 = vmatmul.mubr.bf16.gmra.mxu0 %v2361
      %v2454 = vpop.f32.mrf.mxu0
      %v2455 = vadd.f32 0.0, %v2454
      %v2456 = vpop.f32.mrf.mxu0
      %v2457 = vpop.f32.mrf.mxu0
      %v2458 = vadd.f32 0.0, %v2457
      %v2459 = vpop.f32.mrf.mxu0
      %2460 = vmatprep.mubr.bf16.mxu0 0
      %2461 = vmatmul.mubr.bf16.gmra.mxu0 %v2363
      %v2462 = vpop.f32.mrf.mxu0
      %v2463 = vadd.f32 0.0, %v2462
      %v2464 = vpop.f32.mrf.mxu0
      %v2465 = vpop.f32.mrf.mxu0
      %v2466 = vadd.f32 0.0, %v2465
      %v2467 = vpop.f32.mrf.mxu0
      %2468 = vmatprep.mubr.bf16.mxu0 0
      %2469 = vmatmul.mubr.bf16.gmra.mxu0 %v2365
      %v2470 = vpop.f32.mrf.mxu0
      %v2471 = vadd.f32 0.0, %v2470
      %v2472 = vpop.f32.mrf.mxu0
      %v2473 = vpop.f32.mrf.mxu0
      %v2474 = vadd.f32 0.0, %v2473
      %v2475 = vpop.f32.mrf.mxu0
      %2476 = vmatprep.mubr.bf16.mxu0 0
      %2477 = vmatmul.mubr.bf16.gmra.mxu0 %v2367
      %v2478 = vpop.f32.mrf.mxu0
      %v2479 = vadd.f32 0.0, %v2478
      %v2480 = vpop.f32.mrf.mxu0
      %v2481 = vpop.f32.mrf.mxu0
      %v2482 = vadd.f32 0.0, %v2481
      %v2483 = vpop.f32.mrf.mxu0
      %2484 = vmatprep.mubr.bf16.mxu0 0
      %2485 = vmatmul.mubr.bf16.gmra.mxu0 %v2369
      %v2486 = vpop.f32.mrf.mxu0
      %v2487 = vadd.f32 0.0, %v2486
      %v2488 = vpop.f32.mrf.mxu0
      %v2489 = vpop.f32.mrf.mxu0
      %v2490 = vadd.f32 0.0, %v2489
      %v2491 = vpop.f32.mrf.mxu0
      %2492 = vmatprep.mubr.bf16.mxu0 0
      %2493 = vmatmul.mubr.bf16.gmra.mxu0 %v2371
      %v2494 = vpop.f32.mrf.mxu0
      %v2495 = vadd.f32 0.0, %v2494
      %v2496 = vpop.f32.mrf.mxu0
      %v2497 = vpop.f32.mrf.mxu0
      %v2498 = vadd.f32 0.0, %v2497
      %v2499 = vpop.f32.mrf.mxu0
      %2500 = vmatprep.mubr.bf16.mxu0 0
      %2501 = vmatmul.mubr.bf16.gmra.mxu0 %v2373
      %v2502 = vpop.f32.mrf.mxu0
      %v2503 = vadd.f32 0.0, %v2502
      %v2504 = vpop.f32.mrf.mxu0
      %v2505 = vpop.f32.mrf.mxu0
      %v2506 = vadd.f32 0.0, %v2505
      %v2507 = vpop.f32.mrf.mxu0
      %2508 = vmatprep.mubr.bf16.mxu0 0
      %2509 = vmatmul.mubr.bf16.gmra.mxu0 %v2375
      %v2510 = vpop.f32.mrf.mxu0
      %v2511 = vadd.f32 0.0, %v2510
      %v2512 = vpop.f32.mrf.mxu0
      %v2513 = vpop.f32.mrf.mxu0
      %v2514 = vadd.f32 0.0, %v2513
      %v2515 = vpop.f32.mrf.mxu0
      %2516 = vmatprep.mubr.bf16.mxu0 0
      %2517 = vmatmul.mubr.bf16.gmra.mxu0 %v2377
      %v2518 = vpop.f32.mrf.mxu0
      %v2519 = vadd.f32 0.0, %v2518
      %v2520 = vpop.f32.mrf.mxu0
      %v2521 = vpop.f32.mrf.mxu0
      %v2522 = vadd.f32 0.0, %v2521
      %v2523 = vpop.f32.mrf.mxu0
      %2524 = vmatprep.mubr.bf16.mxu0 0
      %2525 = vmatmul.mubr.bf16.gmra.mxu0 %v2379
      %v2526 = vpop.f32.mrf.mxu0
      %v2527 = vadd.f32 0.0, %v2526
      %v2528 = vpop.f32.mrf.mxu0
      %v2529 = vpop.f32.mrf.mxu0
      %v2530 = vadd.f32 0.0, %v2529
      %v2531 = vpop.f32.mrf.mxu0
      %2532 = vmatprep.mubr.bf16.mxu0 0
      %2533 = vmatmul.mubr.bf16.gmra.mxu0 %v2381
      %v2534 = vpop.f32.mrf.mxu0
      %v2535 = vadd.f32 0.0, %v2534
      %v2536 = vpop.f32.mrf.mxu0
      %v2537 = vpop.f32.mrf.mxu0
      %v2538 = vadd.f32 0.0, %v2537
      %v2539 = vpop.f32.mrf.mxu0
      %2540 = vmatprep.mubr.bf16.mxu0 0
      %2541 = vmatmul.mubr.bf16.gmra.mxu0 %v2383
      %v2542 = vpop.f32.mrf.mxu0
      %v2543 = vadd.f32 0.0, %v2542
      %v2544 = vpop.f32.mrf.mxu0
      %v2545 = vpop.f32.mrf.mxu0
      %v2546 = vadd.f32 0.0, %v2545
      %v2547 = vpop.f32.mrf.mxu0
      %2548 = vdwg.mxu0
      %v2551 = vunpack.c.l.b16 %v1718
      %v2552 = vunpack.c.l.b16 %v1719
      %v2553 = vpack.c.b16 %v2552, %v2551
      %v2555 = vsel %vm895, %v2553, 0
      %2557 = vmatprep.subr.bf16.mxu0 0
      %2558 = vmatpush1.bf16.msra.mxu0 0
      %2559 = vmatprep.subr.bf16.mxu0 0
      %2560 = vmatpush1.bf16.msra.mxu0 0
      %2561 = vmatprep.subr.bf16.mxu0 0
      %2562 = vmatpush1.bf16.msra.mxu0 0
      %2563 = vmatprep.subr.bf16.mxu0 0
      %2564 = vmatpush1.bf16.msra.mxu0 0
      %2565 = vmatprep.subr.bf16.mxu0 0
      %2566 = vmatpush1.bf16.msra.mxu0 0
      %2567 = vmatprep.subr.bf16.mxu0 0
      %2568 = vmatpush1.bf16.msra.mxu0 0
      %2569 = vmatprep.subr.bf16.mxu0 0
      %2570 = vmatpush1.bf16.msra.mxu0 0
      %2571 = vmatprep.subr.bf16.mxu0 0
      %2572 = vmatpush1.bf16.msra.mxu0 %v2555
      %2573 = vmatprep.subr.bf16.mxu0 0
      %2574 = vmatpush2.bf16.msra.mxu0 0
      %2575 = vmatprep.subr.bf16.mxu0 0
      %2576 = vmatpush2.bf16.msra.mxu0 0
      %2577 = vmatprep.subr.bf16.mxu0 0
      %2578 = vmatpush2.bf16.msra.mxu0 0
      %2579 = vmatprep.subr.bf16.mxu0 0
      %2580 = vmatpush2.bf16.msra.mxu0 0
      %2581 = vmatprep.subr.bf16.mxu0 0
      %2582 = vmatpush2.bf16.msra.mxu0 0
      %2583 = vmatprep.subr.bf16.mxu0 0
      %2584 = vmatpush2.bf16.msra.mxu0 0
      %2585 = vmatprep.subr.bf16.mxu0 0
      %2586 = vmatpush2.bf16.msra.mxu0 0
      %2587 = vmatprep.subr.bf16.mxu0 0
      %2588 = vmatpush2.bf16.msra.mxu0 0
      %2589 = vmatprep.mubr.bf16.mxu0 0
      %2590 = vmatmul.mubr.bf16.gmra.mxu0 %v2355
      %v2591 = vpop.f32.mrf.mxu0
      %v2592 = vadd.f32 %v2423, %v2591
      %v2593 = vpop.f32.mrf.mxu0
      %v2594 = vpop.f32.mrf.mxu0
      %v2595 = vadd.f32 %v2426, %v2594
      %v2596 = vpop.f32.mrf.mxu0
      %2597 = vmatprep.mubr.bf16.mxu0 0
      %2598 = vmatmul.mubr.bf16.gmra.mxu0 %v2353
      %v2599 = vpop.f32.mrf.mxu0
      %v2600 = vadd.f32 %v2431, %v2599
      %v2601 = vpop.f32.mrf.mxu0
      %v2602 = vpop.f32.mrf.mxu0
      %v2603 = vadd.f32 %v2434, %v2602
      %v2604 = vpop.f32.mrf.mxu0
      %2605 = vmatprep.mubr.bf16.mxu0 0
      %2606 = vmatmul.mubr.bf16.gmra.mxu0 %v2355
      %v2607 = vpop.f32.mrf.mxu0
      %v2608 = vadd.f32 %v2439, %v2607
      %v2609 = vpop.f32.mrf.mxu0
      %v2610 = vpop.f32.mrf.mxu0
      %v2611 = vadd.f32 %v2442, %v2610
      %v2612 = vpop.f32.mrf.mxu0
      %2613 = vmatprep.mubr.bf16.mxu0 0
      %2614 = vmatmul.mubr.bf16.gmra.mxu0 %v2357
      %v2615 = vpop.f32.mrf.mxu0
      %v2616 = vadd.f32 %v2447, %v2615
      %v2617 = vpop.f32.mrf.mxu0
      %v2618 = vpop.f32.mrf.mxu0
      %v2619 = vadd.f32 %v2450, %v2618
      %v2620 = vpop.f32.mrf.mxu0
      %2621 = vmatprep.mubr.bf16.mxu0 0
      %2622 = vmatmul.mubr.bf16.gmra.mxu0 %v2359
      %v2623 = vpop.f32.mrf.mxu0
      %v2624 = vadd.f32 %v2455, %v2623
      %v2625 = vpop.f32.mrf.mxu0
      %v2626 = vpop.f32.mrf.mxu0
      %v2627 = vadd.f32 %v2458, %v2626
      %v2628 = vpop.f32.mrf.mxu0
      %2629 = vmatprep.mubr.bf16.mxu0 0
      %2630 = vmatmul.mubr.bf16.gmra.mxu0 %v2361
      %v2631 = vpop.f32.mrf.mxu0
      %v2632 = vadd.f32 %v2463, %v2631
      %v2633 = vpop.f32.mrf.mxu0
      %v2634 = vpop.f32.mrf.mxu0
      %v2635 = vadd.f32 %v2466, %v2634
      %v2636 = vpop.f32.mrf.mxu0
      %2637 = vmatprep.mubr.bf16.mxu0 0
      %2638 = vmatmul.mubr.bf16.gmra.mxu0 %v2363
      %v2639 = vpop.f32.mrf.mxu0
      %v2640 = vadd.f32 %v2471, %v2639
      %v2641 = vpop.f32.mrf.mxu0
      %v2642 = vpop.f32.mrf.mxu0
      %v2643 = vadd.f32 %v2474, %v2642
      %v2644 = vpop.f32.mrf.mxu0
      %2645 = vmatprep.mubr.bf16.mxu0 0
      %2646 = vmatmul.mubr.bf16.gmra.mxu0 %v2365
      %v2647 = vpop.f32.mrf.mxu0
      %v2648 = vadd.f32 %v2479, %v2647
      %v2649 = vpop.f32.mrf.mxu0
      %v2650 = vpop.f32.mrf.mxu0
      %v2651 = vadd.f32 %v2482, %v2650
      %v2652 = vpop.f32.mrf.mxu0
      %2653 = vmatprep.mubr.bf16.mxu0 0
      %2654 = vmatmul.mubr.bf16.gmra.mxu0 %v2367
      %v2655 = vpop.f32.mrf.mxu0
      %v2656 = vadd.f32 %v2487, %v2655
      %v2657 = vpop.f32.mrf.mxu0
      %v2658 = vpop.f32.mrf.mxu0
      %v2659 = vadd.f32 %v2490, %v2658
      %v2660 = vpop.f32.mrf.mxu0
      %2661 = vmatprep.mubr.bf16.mxu0 0
      %2662 = vmatmul.mubr.bf16.gmra.mxu0 %v2369
      %v2663 = vpop.f32.mrf.mxu0
      %v2664 = vadd.f32 %v2495, %v2663
      %v2665 = vpop.f32.mrf.mxu0
      %v2666 = vpop.f32.mrf.mxu0
      %v2667 = vadd.f32 %v2498, %v2666
      %v2668 = vpop.f32.mrf.mxu0
      %2669 = vmatprep.mubr.bf16.mxu0 0
      %2670 = vmatmul.mubr.bf16.gmra.mxu0 %v2371
      %v2671 = vpop.f32.mrf.mxu0
      %v2672 = vadd.f32 %v2503, %v2671
      %v2673 = vpop.f32.mrf.mxu0
      %v2674 = vpop.f32.mrf.mxu0
      %v2675 = vadd.f32 %v2506, %v2674
      %v2676 = vpop.f32.mrf.mxu0
      %2677 = vmatprep.mubr.bf16.mxu0 0
      %2678 = vmatmul.mubr.bf16.gmra.mxu0 %v2373
      %v2679 = vpop.f32.mrf.mxu0
      %v2680 = vadd.f32 %v2511, %v2679
      %v2681 = vpop.f32.mrf.mxu0
      %v2682 = vpop.f32.mrf.mxu0
      %v2683 = vadd.f32 %v2514, %v2682
      %v2684 = vpop.f32.mrf.mxu0
      %2685 = vmatprep.mubr.bf16.mxu0 0
      %2686 = vmatmul.mubr.bf16.gmra.mxu0 %v2375
      %v2687 = vpop.f32.mrf.mxu0
      %v2688 = vadd.f32 %v2519, %v2687
      %v2689 = vpop.f32.mrf.mxu0
      %v2690 = vpop.f32.mrf.mxu0
      %v2691 = vadd.f32 %v2522, %v2690
      %v2692 = vpop.f32.mrf.mxu0
      %2693 = vmatprep.mubr.bf16.mxu0 0
      %2694 = vmatmul.mubr.bf16.gmra.mxu0 %v2377
      %v2695 = vpop.f32.mrf.mxu0
      %v2696 = vadd.f32 %v2527, %v2695
      %v2697 = vpop.f32.mrf.mxu0
      %v2698 = vpop.f32.mrf.mxu0
      %v2699 = vadd.f32 %v2530, %v2698
      %v2700 = vpop.f32.mrf.mxu0
      %2701 = vmatprep.mubr.bf16.mxu0 0
      %2702 = vmatmul.mubr.bf16.gmra.mxu0 %v2379
      %v2703 = vpop.f32.mrf.mxu0
      %v2704 = vadd.f32 %v2535, %v2703
      %v2705 = vpop.f32.mrf.mxu0
      %v2706 = vpop.f32.mrf.mxu0
      %v2707 = vadd.f32 %v2538, %v2706
      %v2708 = vpop.f32.mrf.mxu0
      %2709 = vmatprep.mubr.bf16.mxu0 0
      %2710 = vmatmul.mubr.bf16.gmra.mxu0 %v2381
      %v2711 = vpop.f32.mrf.mxu0
      %v2712 = vadd.f32 %v2543, %v2711
      %v2713 = vpop.f32.mrf.mxu0
      %v2714 = vpop.f32.mrf.mxu0
      %v2715 = vadd.f32 %v2546, %v2714
      %v2716 = vpop.f32.mrf.mxu0
      %2717 = vdwg.mxu0
      %v2720 = vunpack.c.l.b16 %v1722
      %v2721 = vunpack.c.l.b16 %v1723
      %v2722 = vpack.c.b16 %v2721, %v2720
      %v2724 = vsel %vm895, %v2722, 0
      %2726 = vmatprep.subr.bf16.mxu0 0
      %2727 = vmatpush1.bf16.msra.mxu0 0
      %2728 = vmatprep.subr.bf16.mxu0 0
      %2729 = vmatpush1.bf16.msra.mxu0 0
      %2730 = vmatprep.subr.bf16.mxu0 0
      %2731 = vmatpush1.bf16.msra.mxu0 0
      %2732 = vmatprep.subr.bf16.mxu0 0
      %2733 = vmatpush1.bf16.msra.mxu0 0
      %2734 = vmatprep.subr.bf16.mxu0 0
      %2735 = vmatpush1.bf16.msra.mxu0 0
      %2736 = vmatprep.subr.bf16.mxu0 0
      %2737 = vmatpush1.bf16.msra.mxu0 0
      %2738 = vmatprep.subr.bf16.mxu0 0
      %2739 = vmatpush1.bf16.msra.mxu0 0
      %2740 = vmatprep.subr.bf16.mxu0 0
      %2741 = vmatpush1.bf16.msra.mxu0 %v2724
      %2742 = vmatprep.subr.bf16.mxu0 0
      %2743 = vmatpush2.bf16.msra.mxu0 0
      %2744 = vmatprep.subr.bf16.mxu0 0
      %2745 = vmatpush2.bf16.msra.mxu0 0
      %2746 = vmatprep.subr.bf16.mxu0 0
      %2747 = vmatpush2.bf16.msra.mxu0 0
      %2748 = vmatprep.subr.bf16.mxu0 0
      %2749 = vmatpush2.bf16.msra.mxu0 0
      %2750 = vmatprep.subr.bf16.mxu0 0
      %2751 = vmatpush2.bf16.msra.mxu0 0
      %2752 = vmatprep.subr.bf16.mxu0 0
      %2753 = vmatpush2.bf16.msra.mxu0 0
      %2754 = vmatprep.subr.bf16.mxu0 0
      %2755 = vmatpush2.bf16.msra.mxu0 0
      %2756 = vmatprep.subr.bf16.mxu0 0
      %2757 = vmatpush2.bf16.msra.mxu0 0
      %2758 = vmatprep.mubr.bf16.mxu0 0
      %2759 = vmatmul.mubr.bf16.gmra.mxu0 %v2355
      %v2760 = vpop.f32.mrf.mxu0
      %v2761 = vadd.f32 0.0, %v2760
      %v2762 = vpop.f32.mrf.mxu0
      %v2763 = vpop.f32.mrf.mxu0
      %v2764 = vadd.f32 0.0, %v2763
      %v2765 = vpop.f32.mrf.mxu0
      %2766 = vmatprep.mubr.bf16.mxu0 0
      %2767 = vmatmul.mubr.bf16.gmra.mxu0 %v2357
      %v2768 = vpop.f32.mrf.mxu0
      %v2769 = vadd.f32 0.0, %v2768
      %v2770 = vpop.f32.mrf.mxu0
      %v2771 = vpop.f32.mrf.mxu0
      %v2772 = vadd.f32 0.0, %v2771
      %v2773 = vpop.f32.mrf.mxu0
      %2774 = vmatprep.mubr.bf16.mxu0 0
      %2775 = vmatmul.mubr.bf16.gmra.mxu0 %v2359
      %v2776 = vpop.f32.mrf.mxu0
      %v2777 = vadd.f32 0.0, %v2776
      %v2778 = vpop.f32.mrf.mxu0
      %v2779 = vpop.f32.mrf.mxu0
      %v2780 = vadd.f32 0.0, %v2779
      %v2781 = vpop.f32.mrf.mxu0
      %2782 = vmatprep.mubr.bf16.mxu0 0
      %2783 = vmatmul.mubr.bf16.gmra.mxu0 %v2361
      %v2784 = vpop.f32.mrf.mxu0
      %v2785 = vadd.f32 0.0, %v2784
      %v2786 = vpop.f32.mrf.mxu0
      %v2787 = vpop.f32.mrf.mxu0
      %v2788 = vadd.f32 0.0, %v2787
      %v2789 = vpop.f32.mrf.mxu0
      %2790 = vmatprep.mubr.bf16.mxu0 0
      %2791 = vmatmul.mubr.bf16.gmra.mxu0 %v2363
      %v2792 = vpop.f32.mrf.mxu0
      %v2793 = vadd.f32 0.0, %v2792
      %v2794 = vpop.f32.mrf.mxu0
      %v2795 = vpop.f32.mrf.mxu0
      %v2796 = vadd.f32 0.0, %v2795
      %v2797 = vpop.f32.mrf.mxu0
      %2798 = vmatprep.mubr.bf16.mxu0 0
      %2799 = vmatmul.mubr.bf16.gmra.mxu0 %v2365
      %v2800 = vpop.f32.mrf.mxu0
      %v2801 = vadd.f32 0.0, %v2800
      %v2802 = vpop.f32.mrf.mxu0
      %v2803 = vpop.f32.mrf.mxu0
      %v2804 = vadd.f32 0.0, %v2803
      %v2805 = vpop.f32.mrf.mxu0
      %2806 = vmatprep.mubr.bf16.mxu0 0
      %2807 = vmatmul.mubr.bf16.gmra.mxu0 %v2367
      %v2808 = vpop.f32.mrf.mxu0
      %v2809 = vadd.f32 0.0, %v2808
      %v2810 = vpop.f32.mrf.mxu0
      %v2811 = vpop.f32.mrf.mxu0
      %v2812 = vadd.f32 0.0, %v2811
      %v2813 = vpop.f32.mrf.mxu0
      %2814 = vmatprep.mubr.bf16.mxu0 0
      %2815 = vmatmul.mubr.bf16.gmra.mxu0 %v2369
      %v2816 = vpop.f32.mrf.mxu0
      %v2817 = vadd.f32 0.0, %v2816
      %v2818 = vpop.f32.mrf.mxu0
      %v2819 = vpop.f32.mrf.mxu0
      %v2820 = vadd.f32 0.0, %v2819
      %v2821 = vpop.f32.mrf.mxu0
      %2822 = vmatprep.mubr.bf16.mxu0 0
      %2823 = vmatmul.mubr.bf16.gmra.mxu0 %v2371
      %v2824 = vpop.f32.mrf.mxu0
      %v2825 = vadd.f32 0.0, %v2824
      %v2826 = vpop.f32.mrf.mxu0
      %v2827 = vpop.f32.mrf.mxu0
      %v2828 = vadd.f32 0.0, %v2827
      %v2829 = vpop.f32.mrf.mxu0
      %2830 = vmatprep.mubr.bf16.mxu0 0
      %2831 = vmatmul.mubr.bf16.gmra.mxu0 %v2373
      %v2832 = vpop.f32.mrf.mxu0
      %v2833 = vadd.f32 0.0, %v2832
      %v2834 = vpop.f32.mrf.mxu0
      %v2835 = vpop.f32.mrf.mxu0
      %v2836 = vadd.f32 0.0, %v2835
      %v2837 = vpop.f32.mrf.mxu0
      %2838 = vmatprep.mubr.bf16.mxu0 0
      %2839 = vmatmul.mubr.bf16.gmra.mxu0 %v2375
      %v2840 = vpop.f32.mrf.mxu0
      %v2841 = vadd.f32 0.0, %v2840
      %v2842 = vpop.f32.mrf.mxu0
      %v2843 = vpop.f32.mrf.mxu0
      %v2844 = vadd.f32 0.0, %v2843
      %v2845 = vpop.f32.mrf.mxu0
      %2846 = vmatprep.mubr.bf16.mxu0 0
      %2847 = vmatmul.mubr.bf16.gmra.mxu0 %v2377
      %v2848 = vpop.f32.mrf.mxu0
      %v2849 = vadd.f32 0.0, %v2848
      %v2850 = vpop.f32.mrf.mxu0
      %v2851 = vpop.f32.mrf.mxu0
      %v2852 = vadd.f32 0.0, %v2851
      %v2853 = vpop.f32.mrf.mxu0
      %2854 = vmatprep.mubr.bf16.mxu0 0
      %2855 = vmatmul.mubr.bf16.gmra.mxu0 %v2379
      %v2856 = vpop.f32.mrf.mxu0
      %v2857 = vadd.f32 0.0, %v2856
      %v2858 = vpop.f32.mrf.mxu0
      %v2859 = vpop.f32.mrf.mxu0
      %v2860 = vadd.f32 0.0, %v2859
      %v2861 = vpop.f32.mrf.mxu0
      %2862 = vmatprep.mubr.bf16.mxu0 0
      %2863 = vmatmul.mubr.bf16.gmra.mxu0 %v2381
      %v2864 = vpop.f32.mrf.mxu0
      %v2865 = vadd.f32 0.0, %v2864
      %v2866 = vpop.f32.mrf.mxu0
      %v2867 = vpop.f32.mrf.mxu0
      %v2868 = vadd.f32 0.0, %v2867
      %v2869 = vpop.f32.mrf.mxu0
      %2870 = vmatprep.mubr.bf16.mxu0 0
      %2871 = vmatmul.mubr.bf16.gmra.mxu0 %v2383
      %v2872 = vpop.f32.mrf.mxu0
      %v2873 = vadd.f32 0.0, %v2872
      %v2874 = vpop.f32.mrf.mxu0
      %v2875 = vpop.f32.mrf.mxu0
      %v2876 = vadd.f32 0.0, %v2875
      %v2877 = vpop.f32.mrf.mxu0
      %2878 = vmatprep.mubr.bf16.mxu0 0
      %2879 = vmatmul.mubr.bf16.gmra.mxu0 %v2381
      %v2880 = vpop.f32.mrf.mxu0
      %v2881 = vadd.f32 0.0, %v2880
      %v2882 = vpop.f32.mrf.mxu0
      %v2883 = vpop.f32.mrf.mxu0
      %v2884 = vadd.f32 0.0, %v2883
      %v2885 = vpop.f32.mrf.mxu0
      %2886 = vdwg.mxu0
      %v2887 = vadd.f32 %v2592, %v2761
      %v2888 = vadd.f32 %v2595, %v2764
      %v2889 = vadd.f32 %v2600, %v2769
      %v2890 = vadd.f32 %v2603, %v2772
      %v2891 = vadd.f32 %v2608, %v2777
      %v2892 = vadd.f32 %v2611, %v2780
      %v2893 = vadd.f32 %v2616, %v2785
      %v2894 = vadd.f32 %v2619, %v2788
      %v2895 = vadd.f32 %v2624, %v2793
      %v2896 = vadd.f32 %v2627, %v2796
      %v2897 = vadd.f32 %v2632, %v2801
      %v2898 = vadd.f32 %v2635, %v2804
      %v2899 = vadd.f32 %v2640, %v2809
      %v2900 = vadd.f32 %v2643, %v2812
      %v2901 = vadd.f32 %v2648, %v2817
      %v2902 = vadd.f32 %v2651, %v2820
      %v2903 = vadd.f32 %v2656, %v2825
      %v2904 = vadd.f32 %v2659, %v2828
      %v2905 = vadd.f32 %v2664, %v2833
      %v2906 = vadd.f32 %v2667, %v2836
      %v2907 = vadd.f32 %v2672, %v2841
      %v2908 = vadd.f32 %v2675, %v2844
      %v2909 = vadd.f32 %v2680, %v2849
      %v2910 = vadd.f32 %v2683, %v2852
      %v2911 = vadd.f32 %v2688, %v2857
      %v2912 = vadd.f32 %v2691, %v2860
      %v2913 = vadd.f32 %v2696, %v2865
      %v2914 = vadd.f32 %v2699, %v2868
      %v2915 = vadd.f32 %v2704, %v2873
      %v2916 = vadd.f32 %v2707, %v2876
      %v2917 = vadd.f32 %v2712, %v2881
      %v2918 = vadd.f32 %v2715, %v2884
      %v2919 = vsel %vm770, %v2887, 0.0
      %v2920 = vsel %vm770, %v2888, 0.0
      %v2921 = vadd.f32 %v2919, %v2920
      %v2922 = vsel %vm770, %v2889, 0.0
      %v2923 = vadd.f32 %v2921, %v2922
      %v2924 = vsel %vm770, %v2890, 0.0
      %v2925 = vadd.f32 %v2923, %v2924
      %v2926 = vsel %vm770, %v2891, 0.0
      %v2927 = vadd.f32 %v2925, %v2926
      %v2928 = vsel %vm770, %v2892, 0.0
      %v2929 = vadd.f32 %v2927, %v2928
      %v2930 = vsel %vm770, %v2893, 0.0
      %v2931 = vadd.f32 %v2929, %v2930
      %v2932 = vsel %vm770, %v2894, 0.0
      %v2933 = vadd.f32 %v2931, %v2932
      %v2934 = vsel %vm770, %v2895, 0.0
      %v2935 = vadd.f32 %v2933, %v2934
      %v2936 = vsel %vm770, %v2896, 0.0
      %v2937 = vadd.f32 %v2935, %v2936
      %v2938 = vsel %vm770, %v2897, 0.0
      %v2939 = vadd.f32 %v2937, %v2938
      %v2940 = vsel %vm770, %v2898, 0.0
      %v2941 = vadd.f32 %v2939, %v2940
      %v2942 = vsel %vm770, %v2899, 0.0
      %v2943 = vadd.f32 %v2941, %v2942
      %v2944 = vsel %vm770, %v2900, 0.0
      %v2945 = vadd.f32 %v2943, %v2944
      %v2946 = vsel %vm770, %v2901, 0.0
      %v2947 = vadd.f32 %v2945, %v2946
      %v2948 = vsel %vm770, %v2902, 0.0
      %v2949 = vadd.f32 %v2947, %v2948
      %v2950 = vsel %vm770, %v2903, 0.0
      %v2951 = vadd.f32 %v2949, %v2950
      %v2952 = vsel %vm770, %v2904, 0.0
      %v2953 = vadd.f32 %v2951, %v2952
      %v2954 = vsel %vm770, %v2905, 0.0
      %v2955 = vadd.f32 %v2953, %v2954
      %v2956 = vsel %vm770, %v2906, 0.0
      %v2957 = vadd.f32 %v2955, %v2956
      %v2958 = vsel %vm770, %v2907, 0.0
      %v2959 = vadd.f32 %v2957, %v2958
      %v2960 = vsel %vm770, %v2908, 0.0
      %v2961 = vadd.f32 %v2959, %v2960
      %v2962 = vsel %vm770, %v2909, 0.0
      %v2963 = vadd.f32 %v2961, %v2962
      %v2964 = vsel %vm770, %v2910, 0.0
      %v2965 = vadd.f32 %v2963, %v2964
      %v2966 = vsel %vm770, %v2911, 0.0
      %v2967 = vadd.f32 %v2965, %v2966
      %v2968 = vsel %vm770, %v2912, 0.0
      %v2969 = vadd.f32 %v2967, %v2968
      %v2970 = vsel %vm770, %v2913, 0.0
      %v2971 = vadd.f32 %v2969, %v2970
      %v2972 = vsel %vm770, %v2914, 0.0
      %v2973 = vadd.f32 %v2971, %v2972
      %v2974 = vsel %vm770, %v2915, 0.0
      %v2975 = vadd.f32 %v2973, %v2974
      %v2976 = vsel %vm770, %v2916, 0.0
      %v2977 = vadd.f32 %v2975, %v2976
      %v2978 = vsel %vm770, %v2917, 0.0
      %v2979 = vadd.f32 %v2977, %v2978
      %v2980 = vsel %vm770, %v2918, 0.0
      %v2981 = vadd.f32 %v2979, %v2980
      %v2982 = vrot.slane %v2981, 4
      %v2983 = vadd.f32 %v2981, %v2982
      %v2984 = vrot.slane %v2983, 2
      %v2985 = vadd.f32 %v2983, %v2984
      %v2986 = vrot.slane %v2985, 1
      %v2987 = vadd.f32 %v2985, %v2986
      %v2988 = vmul.f32 %v2887, %v2887
      %v2989 = vmul.f32 %v2888, %v2888
      %v2990 = vmul.f32 %v2889, %v2889
      %v2991 = vmul.f32 %v2890, %v2890
      %v2992 = vmul.f32 %v2891, %v2891
      %v2993 = vmul.f32 %v2892, %v2892
      %v2994 = vmul.f32 %v2893, %v2893
      %v2995 = vmul.f32 %v2894, %v2894
      %v2996 = vmul.f32 %v2895, %v2895
      %v2997 = vmul.f32 %v2896, %v2896
      %v2998 = vmul.f32 %v2897, %v2897
      %v2999 = vmul.f32 %v2898, %v2898
      %v3000 = vmul.f32 %v2899, %v2899
      %v3001 = vmul.f32 %v2900, %v2900
      %v3002 = vmul.f32 %v2901, %v2901
      %v3003 = vmul.f32 %v2902, %v2902
      %v3004 = vmul.f32 %v2903, %v2903
      %v3005 = vmul.f32 %v2904, %v2904
      %v3006 = vmul.f32 %v2905, %v2905
      %v3007 = vmul.f32 %v2906, %v2906
      %v3008 = vmul.f32 %v2907, %v2907
      %v3009 = vmul.f32 %v2908, %v2908
      %v3010 = vmul.f32 %v2909, %v2909
      %v3011 = vmul.f32 %v2910, %v2910
      %v3012 = vmul.f32 %v2911, %v2911
      %v3013 = vmul.f32 %v2912, %v2912
      %v3014 = vmul.f32 %v2913, %v2913
      %v3015 = vmul.f32 %v2914, %v2914
      %v3016 = vmul.f32 %v2915, %v2915
      %v3017 = vmul.f32 %v2916, %v2916
      %v3018 = vmul.f32 %v2917, %v2917
      %v3019 = vmul.f32 %v2918, %v2918
      %v3020 = vsel %vm770, %v2988, 0.0
      %v3021 = vsel %vm770, %v2989, 0.0
      %v3022 = vadd.f32 %v3020, %v3021
      %v3023 = vsel %vm770, %v2990, 0.0
      %v3024 = vadd.f32 %v3022, %v3023
      %v3025 = vsel %vm770, %v2991, 0.0
      %v3026 = vadd.f32 %v3024, %v3025
      %v3027 = vsel %vm770, %v2992, 0.0
      %v3028 = vadd.f32 %v3026, %v3027
      %v3029 = vsel %vm770, %v2993, 0.0
      %v3030 = vadd.f32 %v3028, %v3029
      %v3031 = vsel %vm770, %v2994, 0.0
      %v3032 = vadd.f32 %v3030, %v3031
      %v3033 = vsel %vm770, %v2995, 0.0
      %v3034 = vadd.f32 %v3032, %v3033
      %v3035 = vsel %vm770, %v2996, 0.0
      %v3036 = vadd.f32 %v3034, %v3035
      %v3037 = vsel %vm770, %v2997, 0.0
      %v3038 = vadd.f32 %v3036, %v3037
      %v3039 = vsel %vm770, %v2998, 0.0
      %v3040 = vadd.f32 %v3038, %v3039
      %v3041 = vsel %vm770, %v2999, 0.0
      %v3042 = vadd.f32 %v3040, %v3041
      %v3043 = vsel %vm770, %v3000, 0.0
      %v3044 = vadd.f32 %v3042, %v3043
      %v3045 = vsel %vm770, %v3001, 0.0
      %v3046 = vadd.f32 %v3044, %v3045
      %v3047 = vsel %vm770, %v3002, 0.0
      %v3048 = vadd.f32 %v3046, %v3047
      %v3049 = vsel %vm770, %v3003, 0.0
      %v3050 = vadd.f32 %v3048, %v3049
      %v3051 = vsel %vm770, %v3004, 0.0
      %v3052 = vadd.f32 %v3050, %v3051
      %v3053 = vsel %vm770, %v3005, 0.0
      %v3054 = vadd.f32 %v3052, %v3053
      %v3055 = vsel %vm770, %v3006, 0.0
      %v3056 = vadd.f32 %v3054, %v3055
      %v3057 = vsel %vm770, %v3007, 0.0
      %v3058 = vadd.f32 %v3056, %v3057
      %v3059 = vsel %vm770, %v3008, 0.0
      %v3060 = vadd.f32 %v3058, %v3059
      %v3061 = vsel %vm770, %v3009, 0.0
      %v3062 = vadd.f32 %v3060, %v3061
      %v3063 = vsel %vm770, %v3010, 0.0
      %v3064 = vadd.f32 %v3062, %v3063
      %v3065 = vsel %vm770, %v3011, 0.0
      %v3066 = vadd.f32 %v3064, %v3065
      %v3067 = vsel %vm770, %v3012, 0.0
      %v3068 = vadd.f32 %v3066, %v3067
      %v3069 = vsel %vm770, %v3013, 0.0
      %v3070 = vadd.f32 %v3068, %v3069
      %v3071 = vsel %vm770, %v3014, 0.0
      %v3072 = vadd.f32 %v3070, %v3071
      %v3073 = vsel %vm770, %v3015, 0.0
      %v3074 = vadd.f32 %v3072, %v3073
      %v3075 = vsel %vm770, %v3016, 0.0
      %v3076 = vadd.f32 %v3074, %v3075
      %v3077 = vsel %vm770, %v3017, 0.0
      %v3078 = vadd.f32 %v3076, %v3077
      %v3079 = vsel %vm770, %v3018, 0.0
      %v3080 = vadd.f32 %v3078, %v3079
      %v3081 = vsel %vm770, %v3019, 0.0
      %v3082 = vadd.f32 %v3080, %v3081
      %v3083 = vrot.slane %v3082, 4
      %v3084 = vadd.f32 %v3082, %v3083
      %v3085 = vrot.slane %v3084, 2
      %v3086 = vadd.f32 %v3084, %v3085
      %v3087 = vrot.slane %v3086, 1
      %v3088 = vadd.f32 %v3086, %v3087
      %v3089 = vmul.f32 %v2987, 0.00390625
      %v3090 = vmul.f32 %v3088, 0.00390625
      %v3091 = vmul.f32 %v3089, %v3089
      %v3092 = vsub.f32 %v3090, %v3091
      %v3093 = vadd.f32 %v3092, 1e-05
      %v3094 = vrsqrt.pop %v3093
      %v3095 = vsub.f32 %v2887, %v3089
      %v3096 = vsub.f32 %v2888, %v3089
      %v3097 = vsub.f32 %v2889, %v3089
      %v3098 = vsub.f32 %v2890, %v3089
      %v3099 = vsub.f32 %v2891, %v3089
      %v3100 = vsub.f32 %v2892, %v3089
      %v3101 = vsub.f32 %v2893, %v3089
      %v3102 = vsub.f32 %v2894, %v3089
      %v3103 = vsub.f32 %v2895, %v3089
      %v3104 = vsub.f32 %v2896, %v3089
      %v3105 = vsub.f32 %v2897, %v3089
      %v3106 = vsub.f32 %v2898, %v3089
      %v3107 = vsub.f32 %v2899, %v3089
      %v3108 = vsub.f32 %v2900, %v3089
      %v3109 = vsub.f32 %v2901, %v3089
      %v3110 = vsub.f32 %v2902, %v3089
      %v3111 = vsub.f32 %v2903, %v3089
      %v3112 = vsub.f32 %v2904, %v3089
      %v3113 = vsub.f32 %v2905, %v3089
      %v3114 = vsub.f32 %v2906, %v3089
      %v3115 = vsub.f32 %v2907, %v3089
      %v3116 = vsub.f32 %v2908, %v3089
      %v3117 = vsub.f32 %v2909, %v3089
      %v3118 = vsub.f32 %v2910, %v3089
      %v3119 = vsub.f32 %v2911, %v3089
      %v3120 = vsub.f32 %v2912, %v3089
      %v3121 = vsub.f32 %v2913, %v3089
      %v3122 = vsub.f32 %v2914, %v3089
      %v3123 = vsub.f32 %v2915, %v3089
      %v3124 = vsub.f32 %v2916, %v3089
      %v3125 = vsub.f32 %v2917, %v3089
      %v3126 = vsub.f32 %v2918, %v3089
      %v3127 = vmul.f32 %v3095, %v3094
      %v3128 = vmul.f32 %v3096, %v3094
      %v3129 = vmul.f32 %v3097, %v3094
      %v3130 = vmul.f32 %v3098, %v3094
      %v3131 = vmul.f32 %v3099, %v3094
      %v3132 = vmul.f32 %v3100, %v3094
      %v3133 = vmul.f32 %v3101, %v3094
      %v3134 = vmul.f32 %v3102, %v3094
      %v3135 = vmul.f32 %v3103, %v3094
      %v3136 = vmul.f32 %v3104, %v3094
      %v3137 = vmul.f32 %v3105, %v3094
      %v3138 = vmul.f32 %v3106, %v3094
      %v3139 = vmul.f32 %v3107, %v3094
      %v3140 = vmul.f32 %v3108, %v3094
      %v3141 = vmul.f32 %v3109, %v3094
      %v3142 = vmul.f32 %v3110, %v3094
      %v3143 = vmul.f32 %v3111, %v3094
      %v3144 = vmul.f32 %v3112, %v3094
      %v3145 = vmul.f32 %v3113, %v3094
      %v3146 = vmul.f32 %v3114, %v3094
      %v3147 = vmul.f32 %v3115, %v3094
      %v3148 = vmul.f32 %v3116, %v3094
      %v3149 = vmul.f32 %v3117, %v3094
      %v3150 = vmul.f32 %v3118, %v3094
      %v3151 = vmul.f32 %v3119, %v3094
      %v3152 = vmul.f32 %v3120, %v3094
      %v3153 = vmul.f32 %v3121, %v3094
      %v3154 = vmul.f32 %v3122, %v3094
      %v3155 = vmul.f32 %v3123, %v3094
      %v3156 = vmul.f32 %v3124, %v3094
      %v3157 = vmul.f32 %v3125, %v3094
      %v3158 = vmul.f32 %v3126, %v3094
      %v3159 = vadd.f32 %v172, %v3127
      %v3160 = vadd.f32 %v173, %v3128
      %v3161 = vadd.f32 %v174, %v3129
      %v3162 = vadd.f32 %v175, %v3130
      %v3163 = vadd.f32 %v176, %v3131
      %v3164 = vadd.f32 %v177, %v3132
      %v3165 = vadd.f32 %v178, %v3133
      %v3166 = vadd.f32 %v179, %v3134
      %v3167 = vadd.f32 %v180, %v3135
      %v3168 = vadd.f32 %v181, %v3136
      %v3169 = vadd.f32 %v182, %v3137
      %v3170 = vadd.f32 %v183, %v3138
      %v3171 = vadd.f32 %v184, %v3139
      %v3172 = vadd.f32 %v185, %v3140
      %v3173 = vadd.f32 %v186, %v3141
      %v3174 = vadd.f32 %v187, %v3142
      %v3175 = vadd.f32 %v188, %v3143
      %v3176 = vadd.f32 %v189, %v3144
      %v3177 = vadd.f32 %v190, %v3145
      %v3178 = vadd.f32 %v191, %v3146
      %v3179 = vadd.f32 %v192, %v3147
      %v3180 = vadd.f32 %v193, %v3148
      %v3181 = vadd.f32 %v194, %v3149
      %v3182 = vadd.f32 %v195, %v3150
      %v3183 = vadd.f32 %v196, %v3151
      %v3184 = vadd.f32 %v197, %v3152
      %v3185 = vadd.f32 %v198, %v3153
      %v3186 = vadd.f32 %v199, %v3154
      %v3187 = vadd.f32 %v200, %v3155
      %v3188 = vadd.f32 %v201, %v3156
      %v3189 = vadd.f32 %v202, %v3157
      %v3190 = vadd.f32 %v203, %v3158
      %3191 = vst.msk [vmem:[%s170] sm:$0xff] %vm770, %v3159
      %3192 = vst.msk [vmem:[%s170 + $0x8] sm:$0xff] %vm770, %v3160
      %3193 = vst.msk [vmem:[%s170 + $0x10] sm:$0xff] %vm770, %v3161
      %3194 = vst.msk [vmem:[%s170 + $0x18] sm:$0xff] %vm770, %v3162
      %3195 = vst.msk [vmem:[%s170 + $0x20] sm:$0xff] %vm770, %v3163
      %3196 = vst.msk [vmem:[%s170 + $0x28] sm:$0xff] %vm770, %v3164
      %3197 = vst.msk [vmem:[%s170 + $0x30] sm:$0xff] %vm770, %v3165
      %3198 = vst.msk [vmem:[%s170 + $0x38] sm:$0xff] %vm770, %v3166
      %3199 = vst.msk [vmem:[%s170 + $0x40] sm:$0xff] %vm770, %v3167
      %3200 = vst.msk [vmem:[%s170 + $0x48] sm:$0xff] %vm770, %v3168
      %3201 = vst.msk [vmem:[%s170 + $0x50] sm:$0xff] %vm770, %v3169
      %3202 = vst.msk [vmem:[%s170 + $0x58] sm:$0xff] %vm770, %v3170
      %3203 = vst.msk [vmem:[%s170 + $0x60] sm:$0xff] %vm770, %v3171
      %3204 = vst.msk [vmem:[%s170 + $0x68] sm:$0xff] %vm770, %v3172
      %3205 = vst.msk [vmem:[%s170 + $0x70] sm:$0xff] %vm770, %v3173
      %3206 = vst.msk [vmem:[%s170 + $0x78] sm:$0xff] %vm770, %v3174
      %3207 = vst.msk [vmem:[%s170 + $0x80] sm:$0xff] %vm770, %v3175
      %3208 = vst.msk [vmem:[%s170 + $0x88] sm:$0xff] %vm770, %v3176
      %3209 = vst.msk [vmem:[%s170 + $0x90] sm:$0xff] %vm770, %v3177
      %3210 = vst.msk [vmem:[%s170 + $0x98] sm:$0xff] %vm770, %v3178
      %3211 = vst.msk [vmem:[%s170 + $0xa0] sm:$0xff] %vm770, %v3179
      %3212 = vst.msk [vmem:[%s170 + $0xa8] sm:$0xff] %vm770, %v3180
      %3213 = vst.msk [vmem:[%s170 + $0xb0] sm:$0xff] %vm770, %v3181
      %3214 = vst.msk [vmem:[%s170 + $0xb8] sm:$0xff] %vm770, %v3182
      %3215 = vst.msk [vmem:[%s170 + $0xc0] sm:$0xff] %vm770, %v3183
      %3216 = vst.msk [vmem:[%s170 + $0xc8] sm:$0xff] %vm770, %v3184
      %3217 = vst.msk [vmem:[%s170 + $0xd0] sm:$0xff] %vm770, %v3185
      %3218 = vst.msk [vmem:[%s170 + $0xd8] sm:$0xff] %vm770, %v3186
      %3219 = vst.msk [vmem:[%s170 + $0xe0] sm:$0xff] %vm770, %v3187
      %3220 = vst.msk [vmem:[%s170 + $0xe8] sm:$0xff] %vm770, %v3188
      %3221 = vst.msk [vmem:[%s170 + $0xf0] sm:$0xff] %vm770, %v3189
      %3222 = vst.msk [vmem:[%s170 + $0xf8] sm:$0xff] %vm770, %v3190
      %p3223 = scmp.lt.s32.totalorder %s14, 1
      %s3224 = scalar_select %p3223, %s14, 1
      %s3225 = smul.addr %s3224, 32
      %s3226 = smul.addr %s3225, 8
      %s3227 = scalar_lea.vmem %s3, %s3226
      // Predicated region
      $region33: #{tpu_custom_call.1} parent=31 // pred_check
        %p3228 = pneg %p100
      $region34: #{tpu_custom_call.1} parent=31 // pred_check_branch
        %3230 = sbr.rel (%p3228) target = $region36
      $region35: #{tpu_custom_call.1} parent=31 // pred_region
        _
      $region36: #{tpu_custom_call.1} parent=31 // pred_fallthru
        _
    $region32: #{tpu_custom_call.1} parent=5 // pred_fallthru
      _
    %p3231 = scmp.le.s32.totalorder 2, %s9
    // Predicated region
    $region37: #{tpu_custom_call.1} parent=5 // pred_check
      %p3232 = pneg %p3231
    $region38: #{tpu_custom_call.1} parent=5 // pred_check_branch
      %3234 = sbr.rel (%p3232) target = $region40
    $region39: #{tpu_custom_call.1} parent=5 // pred_region
      %s3235 = ssub.s32 %s9, 2
      // Predicated region
      $region41: #{tpu_custom_call.1} parent=39 // pred_check
        %p3236 = pneg %p106
      $region42: #{tpu_custom_call.1} parent=39 // pred_check_branch
        %3238 = sbr.rel (%p3236) target = $region44
      $region43: #{tpu_custom_call.1} parent=39 // pred_region
        %p3239 = scmp.lt.s32.totalorder %s15, 1
        %s3240 = scalar_select %p3239, %s15, 1
        %s3241 = smul.addr %s3240, 32
        %s3242 = smul.addr %s3241, 8
        %s3243 = scalar_lea.vmem %s3, %s3242
      $region44: #{tpu_custom_call.1} parent=39 // pred_fallthru
        _
    $region40: #{tpu_custom_call.1} parent=5 // pred_fallthru
      _
  $region6: #{tpu_custom_call.1} parent=0 // loop_footer
    %s13 = sadd.s32 1, %s9
  $region7: #{tpu_custom_call.1} parent=0 // loop_footer_branch
    %8 = sbr.rel target = $region3
  $region8: #{tpu_custom_call.1} parent=0 // loop_exit
    _

</llo_original>
